<compile_context>
chip_gen: v7x
topology: tpu7x:2x2x1
jax: 0.10.0
libtpu: 0.0.40
codegen_flags: <defaults>
</compile_context>

<pallas_src>
import functools

import jax
import jax.numpy as jnp
from jax.experimental import pallas as pl
from jax.experimental.pallas import tpu as pltpu

LANE = 128
SUBLANE = 8


def _round_up(x, m):
    return ((x + m - 1) // m) * m


def _pad_to(x, shape):
    return jnp.pad(x, [(0, s - d) for d, s in zip(x.shape, shape)])


def _vmem_limit_bytes():
    """Scoped-VMEM budget: ~3/4 of physical VMEM, capped at 96 MiB (=> ~48 MiB on v7x)."""
    cap = 64 * 1024 * 1024
    try:
        info = pltpu.get_tpu_info()
        cap = int(getattr(info, "vmem_capacity_bytes", cap))
    except Exception:
        pass
    return min(cap * 3 // 4, 96 * 1024 * 1024)


# ---------------------------------------------------------------------------
# Streamed GCN layer:  out = relu?((A @ h) @ W + b)
#   grid = (row tiles [parallel], k tiles [arbitrary]); A streamed in (tm, tk) tiles,
#   h resident in VMEM when it fits (else streamed per k tile), f32 epilogue.
# ---------------------------------------------------------------------------
def _gcn_layer_kernel(a_ref, h_ref, w_ref, b_ref, out_ref, acc_ref, *,
                      apply_relu, h_resident, tk):
    k = pl.program_id(1)

    @pl.when(k == 0)
    def _():
        acc_ref[...] = jnp.zeros_like(acc_ref)

    if h_resident:
        start = pl.multiple_of(k * tk, 128)
        h_blk = h_ref[pl.ds(start, tk), :]
    else:
        h_blk = h_ref[...]

    # Aggregation: acc += A[i, k] @ h[k]   (bf16 x bf16 -> f32 accumulate on the MXU).
    acc_ref[...] += jnp.dot(a_ref[...], h_blk, preferred_element_type=jnp.float32)

    @pl.when(k == pl.num_programs(1) - 1)
    def _():
        # Feature transform in the epilogue, kept in f32 (no acc downcast):
        # (A @ h) @ W + b == A @ (h @ W) + b.
        z = jnp.dot(acc_ref[...], w_ref[...],
                    preferred_element_type=jnp.float32) + b_ref[...]
        if apply_relu:
            z = jnp.maximum(z, 0.0)
        out_ref[...] = z.astype(out_ref.dtype)


def gcn_layer(a, h, w, b, *, apply_relu, tm, tk, h_resident, vmem_limit):
    n = a.shape[0]
    width = h.shape[1]
    hout = w.shape[1]
    grid = (n // tm, n // tk)

    if h_resident:
        h_spec = pl.BlockSpec((n, width), lambda i, k: (0, 0))      # resident (DMA'd once)
    else:
        h_spec = pl.BlockSpec((tk, width), lambda i, k: (k, 0))     # streamed per k tile

    cost = pl.CostEstimate(
        flops=int(2 * n * n * width + 2 * n * width * hout),
        transcendentals=0,
        bytes_accessed=int(a.size * 2 + h.size * 2 + w.size * 4 + b.size * 4
                           + n * hout * 2),
    )
    return pl.pallas_call(
        functools.partial(_gcn_layer_kernel, apply_relu=apply_relu,
                          h_resident=h_resident, tk=tk),
        out_shape=jax.ShapeDtypeStruct((n, hout), jnp.bfloat16),
        grid_spec=pltpu.PrefetchScalarGridSpec(
            num_scalar_prefetch=0,
            grid=grid,
            in_specs=[
                pl.BlockSpec((tm, tk), lambda i, k: (i, k)),      # A_hat tile (streamed)
                h_spec,                                           # h (resident or streamed)
                pl.BlockSpec((width, hout), lambda i, k: (0, 0)), # W (resident, f32)
                pl.BlockSpec((1, hout), lambda i, k: (0, 0)),     # bias (resident, f32)
            ],
            out_specs=pl.BlockSpec((tm, hout), lambda i, k: (i, 0)),
            scratch_shapes=[pltpu.VMEM((tm, hout), jnp.float32)],
        ),
        compiler_params=pltpu.CompilerParams(
            dimension_semantics=("parallel", "arbitrary"),
            vmem_limit_bytes=vmem_limit,
        ),
        cost_estimate=cost,
    )(a, h, w, b)


# ---------------------------------------------------------------------------
# global_add_pool + lin1 + ReLU + lin2, with a grid over node tiles and a
# (g_pad, 128) f32 reduction accumulator (no full h/pool pull into VMEM).
# ---------------------------------------------------------------------------
def _head_kernel(pool_ref, h_ref, wl1_ref, bl1_ref, wl2_ref, bl2_ref, out_ref, acc_ref):
    k = pl.program_id(0)

    @pl.when(k == 0)
    def _():
        acc_ref[...] = jnp.zeros_like(acc_ref)

    acc_ref[...] += jnp.dot(pool_ref[...], h_ref[...].astype(jnp.float32),
                            preferred_element_type=jnp.float32)

    @pl.when(k == pl.num_programs(0) - 1)
    def _():
        z = jnp.dot(acc_ref[...], wl1_ref[...],
                    preferred_element_type=jnp.float32) + bl1_ref[...]
        z = jnp.maximum(z, 0.0)
        # dropout p=0.5 is identity in eval mode
        out_ref[...] = (jnp.dot(z, wl2_ref[...], preferred_element_type=jnp.float32)
                        + bl2_ref[...]).astype(out_ref.dtype)


def mlp_head(pool, h, wl1, bl1, wl2, bl2, *, tk, vmem_limit):
    g_pad, n = pool.shape
    width = h.shape[1]
    return pl.pallas_call(
        _head_kernel,
        out_shape=jax.ShapeDtypeStruct((g_pad, width), jnp.float32),
        grid_spec=pltpu.PrefetchScalarGridSpec(
            num_scalar_prefetch=0,
            grid=(n // tk,),
            in_specs=[
                pl.BlockSpec((g_pad, tk), lambda k: (0, k)),      # pool tile (f32, 0/1)
                pl.BlockSpec((tk, width), lambda k: (k, 0)),      # h tile (bf16)
                pl.BlockSpec((width, width), lambda k: (0, 0)),
                pl.BlockSpec((1, width), lambda k: (0, 0)),
                pl.BlockSpec((width, width), lambda k: (0, 0)),
                pl.BlockSpec((1, width), lambda k: (0, 0)),
            ],
            out_specs=pl.BlockSpec((g_pad, width), lambda k: (0, 0)),
            scratch_shapes=[pltpu.VMEM((g_pad, width), jnp.float32)],
        ),
        compiler_params=pltpu.CompilerParams(
            dimension_semantics=("arbitrary",),
            vmem_limit_bytes=vmem_limit,
        ),
    )(pool, h, wl1, bl1, wl2, bl2)


# ---------------------------------------------------------------------------
# Fully fused forward (small graphs): 5 GCN layers + pool + MLP head in one
# grid-less pallas_call with A, h, pool and all weights resident in VMEM.
# ---------------------------------------------------------------------------
def _fused_kernel(a_ref, x_ref, ws_ref, bs_ref, pool_ref,
                  wl1_ref, bl1_ref, wl2_ref, bl2_ref, out_ref, h_ref):
    n_layers = ws_ref.shape[0]
    h_ref[...] = x_ref[...].astype(jnp.float32)
    for i in range(n_layers):                       # static unroll (5 layers)
        agg = jnp.dot(a_ref[...], h_ref[...].astype(jnp.bfloat16),
                      preferred_element_type=jnp.float32)
        z = jnp.dot(agg, ws_ref[i], preferred_element_type=jnp.float32) + bs_ref[i]
        if i < n_layers - 1:
            z = jnp.maximum(z, 0.0)
            # TODO(synk): training-mode dropout (random masks) not implemented; eval only.
        h_ref[...] = z
    pooled = jnp.dot(pool_ref[...], h_ref[...], preferred_element_type=jnp.float32)
    z = jnp.dot(pooled, wl1_ref[...], preferred_element_type=jnp.float32) + bl1_ref[...]
    z = jnp.maximum(z, 0.0)
    out_ref[...] = (jnp.dot(z, wl2_ref[...], preferred_element_type=jnp.float32)
                    + bl2_ref[...]).astype(out_ref.dtype)


def fused_forward(a, x0, ws, bs, pool, wl1, bl1, wl2, bl2, *, vmem_limit):
    n_pad, width = x0.shape
    g_pad = pool.shape[0]
    return pl.pallas_call(
        _fused_kernel,
        out_shape=jax.ShapeDtypeStruct((g_pad, width), jnp.float32),
        scratch_shapes=[pltpu.VMEM((n_pad, width), jnp.float32)],
        compiler_params=pltpu.CompilerParams(vmem_limit_bytes=vmem_limit),
    )(a, x0, ws, bs, pool, wl1, bl1, wl2, bl2)


# ---------------------------------------------------------------------------
# Host-side graph preprocessing + full forward.
# ---------------------------------------------------------------------------
def build_normalized_adjacency(edge_index, num_nodes, n_pad):
    """Dense D^{-1/2}(A+I)D^{-1/2} (PyG GCNConv norm), built directly at padded size."""
    src, dst = edge_index[0], edge_index[1]
    a = jnp.zeros((n_pad, n_pad), jnp.float32).at[dst, src].add(1.0)
    self_loops = (jnp.arange(n_pad) < num_nodes).astype(jnp.float32)
    a = a + jnp.diag(self_loops)
    deg = a.sum(axis=1)
    dinv = jnp.where(deg > 0, jax.lax.rsqrt(deg), 0.0)
    return dinv[:, None] * a * dinv[None, :]


def cbs_forward(x, edge_index, batch, params, num_graphs, *, force_streamed=False):
    n, f = x.shape
    width = LANE
    hidden = params["convs"][0][0].shape[1]
    out_dim = params["lin2"][0].shape[1]
    assert f <= width and hidden <= width, "pad width must cover feature/hidden dims"

    vmem_limit = _vmem_limit_bytes()

    # Node padding: 128-multiples for tiny graphs, 512-multiples (tile=512) otherwise.
    n_pad = _round_up(n, 128) if n <= 512 else _round_up(n, 512)
    tile = min(512, n_pad)
    g_pad = _round_up(num_graphs, SUBLANE)

    a_p = build_normalized_adjacency(edge_index, n, n_pad).astype(jnp.bfloat16)
    h0 = _pad_to(x.astype(jnp.float32), (n_pad, width)).astype(jnp.bfloat16)

    batch_pad = jnp.pad(batch.astype(jnp.int32), (0, n_pad - n), constant_values=-1)
    pool_p = (jnp.arange(g_pad, dtype=jnp.int32)[:, None]
              == batch_pad[None, :]).astype(jnp.float32)      # padded nodes -> all-zero cols

    ws = jnp.stack([_pad_to(w.astype(jnp.float32), (width, width))
                    for w, _ in params["convs"]])
    bs = jnp.stack([_pad_to(b.reshape(1, -1).astype(jnp.float32), (1, width))
                    for _, b in params["convs"]])
    wl1 = _pad_to(params["lin1"][0].astype(jnp.float32), (width, width))
    bl1 = _pad_to(params["lin1"][1].reshape(1, -1).astype(jnp.float32), (1, width))
    wl2 = _pad_to(params["lin2"][0].astype(jnp.float32), (width, width))
    bl2 = _pad_to(params["lin2"][1].reshape(1, -1).astype(jnp.float32), (1, width))

    # Fused-path VMEM estimate (2x on A for headroom against compiler copies).
    fused_bytes = (2 * n_pad * n_pad * 2          # A_hat bf16 (+ headroom)
                   + 3 * n_pad * width * 4        # h scratch + layer temporaries
                   + n_pad * width * 2            # x input
                   + g_pad * n_pad * 4            # pool
                   + int(ws.size + bs.size + 4 * width * width) * 4)
    use_fused = (not force_streamed) and (n_pad <= 4096) and (fused_bytes <= vmem_limit)

    if use_fused:
        out_pad = fused_forward(a_p, h0, ws, bs, pool_p, wl1, bl1, wl2, bl2,
                                vmem_limit=vmem_limit)
    else:
        n_layers = len(params["convs"])
        # h resident per layer if its (double-buffered) footprint is a small VMEM fraction.
        h_resident = (2 * n_pad * width * 2) <= vmem_limit // 4
        h = h0
        for i in range(n_layers):
            h = gcn_layer(a_p, h, ws[i], bs[i], apply_relu=(i < n_layers - 1),
                          tm=tile, tk=tile, h_resident=h_resident, vmem_limit=vmem_limit)
            # TODO(synk): training-mode dropout (random masks) not implemented; eval only.
        out_pad = mlp_head(pool_p, h, wl1, bl1, wl2, bl2, tk=tile, vmem_limit=vmem_limit)

    return out_pad[:num_graphs, :out_dim]


def cbs_reference(x, edge_index, batch, params, num_graphs):
    n = x.shape[0]
    a_hat = build_normalized_adjacency(edge_index, n, n)
    pool = (jnp.arange(num_graphs)[:, None] == batch[None, :]).astype(jnp.float32)
    h = x.astype(jnp.float32)
    convs = params["convs"]
    for i, (w, b) in enumerate(convs):
        h = a_hat @ (h @ w) + b
        if i < len(convs) - 1:
            h = jnp.maximum(h, 0.0)
    h = pool @ h
    h = jnp.maximum(h @ params["lin1"][0] + params["lin1"][1], 0.0)
    return h @ params["lin2"][0] + params["lin2"][1]


def init_params(key, feature_dim, hidden_dim):
    dims = [(feature_dim, hidden_dim)] + [(hidden_dim, hidden_dim)] * 4
    keys = jax.random.split(key, len(dims) + 2)
    convs = []
    for k, (din, dout) in zip(keys[:5], dims):
        w = jax.random.normal(k, (din, dout), jnp.float32) * (1.0 / jnp.sqrt(din))
        b = jnp.zeros((dout,), jnp.float32)
        convs.append((w, b))
    wl1 = jax.random.normal(keys[5], (hidden_dim, hidden_dim), jnp.float32) / jnp.sqrt(hidden_dim)
    bl1 = jnp.full((hidden_dim,), 0.01, jnp.float32)
    wl2 = jax.random.normal(keys[6], (hidden_dim, 1), jnp.float32) / jnp.sqrt(hidden_dim)
    bl2 = jnp.full((1,), 0.02, jnp.float32)
    return {"convs": convs, "lin1": (wl1, bl1), "lin2": (wl2, bl2)}


if __name__ == "__main__":
    feature_dim, hidden_dim = 8, 32
    num_nodes, num_graphs = 16, 2

    key = jax.random.PRNGKey(0)
    kx, kp = jax.random.split(key)
    x = jax.random.normal(kx, (num_nodes, feature_dim), jnp.float32)

    # Two graphs of 8 nodes each; bidirectional ring edges within each graph.
    batch = jnp.concatenate([jnp.zeros(8, jnp.int32), jnp.ones(8, jnp.int32)])
    edges = []
    for g in range(num_graphs):
        base = g * 8
        for i in range(8):
            a, b = base + i, base + (i + 1) % 8
            edges.append((a, b))
            edges.append((b, a))
    edge_index = jnp.array(edges, jnp.int32).T  # (2, E)

    params = init_params(kp, feature_dim, hidden_dim)
    ref = cbs_reference(x, edge_index, batch, params, num_graphs)

    # Path 1: fully fused single-kernel forward (small-graph path).
    out_fused = jax.block_until_ready(
        cbs_forward(x, edge_index, batch, params, num_graphs))
    assert out_fused.shape == (num_graphs, 1)
    assert jnp.allclose(out_fused, ref, atol=5e-2, rtol=5e-2), (out_fused, ref)

    # Path 2: streamed per-layer kernels + gridded pooled head (large-graph path).
    out_streamed = jax.block_until_ready(
        cbs_forward(x, edge_index, batch, params, num_graphs, force_streamed=True))
    assert out_streamed.shape == (num_graphs, 1)
    assert jnp.allclose(out_streamed, ref, atol=5e-2, rtol=5e-2), (out_streamed, ref)

    print("KERNEL_OK")
</pallas_src>

<mosaic_0001>
module attributes {stable_mosaic.version = 11 : i64} {
  func.func @_fused_kernel(%arg0: memref<128x128xbf16, #tpu.memory_space<vmem>>, %arg1: memref<128x128xbf16, #tpu.memory_space<vmem>>, %arg2: memref<5x128x128xf32, #tpu.memory_space<vmem>>, %arg3: memref<5x1x128xf32, #tpu.memory_space<vmem>>, %arg4: memref<8x128xf32, #tpu.memory_space<vmem>>, %arg5: memref<128x128xf32, #tpu.memory_space<vmem>>, %arg6: memref<1x128xf32, #tpu.memory_space<vmem>>, %arg7: memref<128x128xf32, #tpu.memory_space<vmem>>, %arg8: memref<1x128xf32, #tpu.memory_space<vmem>>, %arg9: memref<8x128xf32, #tpu.memory_space<vmem>>, %arg10: memref<128x128xf32, #tpu.memory_space<vmem>>) attributes {dimension_semantics = [], scalar_prefetch = 0 : i64, scratch_operands = 1 : i64, tpu.core_type = #tpu.core_type<tc>} {
    %c0 = arith.constant 0 : index
    %c0_0 = arith.constant 0 : index
    %0 = vector.load %arg1[%c0, %c0_0] : memref<128x128xbf16, #tpu.memory_space<vmem>>, vector<128x128xbf16>
    %1 = arith.extf %0 : vector<128x128xbf16> to vector<128x128xf32>
    %c0_1 = arith.constant 0 : index
    %c0_2 = arith.constant 0 : index
    %2 = vector.load %arg10[%c0_1, %c0_2] : memref<128x128xf32, #tpu.memory_space<vmem>>, vector<128x128xf32>
    tpu.vector_store %arg10[%c0_1, %c0_2], %1 {strides = array<i32>} : memref<128x128xf32, #tpu.memory_space<vmem>>, vector<128x128xf32>,
    %c0_3 = arith.constant 0 : index
    %c0_4 = arith.constant 0 : index
    %3 = vector.load %arg0[%c0_3, %c0_4] : memref<128x128xbf16, #tpu.memory_space<vmem>>, vector<128x128xbf16>
    %c0_5 = arith.constant 0 : index
    %c0_6 = arith.constant 0 : index
    %4 = vector.load %arg10[%c0_5, %c0_6] : memref<128x128xf32, #tpu.memory_space<vmem>>, vector<128x128xf32>
    %5 = arith.truncf %4 : vector<128x128xf32> to vector<128x128xbf16>
    %cst = arith.constant dense<0.000000e+00> : vector<128x128xf32>
    %6 = tpu.matmul %3, %5, %cst {dimension_numbers = #tpu.dot_dimension_numbers<[1], [0], [0], [1], [0, 0, 1, 1], [], []>} : vector<128x128xbf16>, vector<128x128xbf16>, vector<128x128xf32> -> vector<128x128xf32>
    %c0_7 = arith.constant 0 : index
    %c0_8 = arith.constant 0 : index
    %c0_9 = arith.constant 0 : index
    %7 = vector.load %arg2[%c0_7, %c0_8, %c0_9] : memref<5x128x128xf32, #tpu.memory_space<vmem>>, vector<1x128x128xf32>
    %8 = vector.shape_cast %7 : vector<1x128x128xf32> to vector<128x128xf32>
    %cst_10 = arith.constant dense<0.000000e+00> : vector<128x128xf32>
    %9 = tpu.matmul %6, %8, %cst_10 {dimension_numbers = #tpu.dot_dimension_numbers<[1], [0], [0], [1], [0, 0, 1, 1], [], []>} : vector<128x128xf32>, vector<128x128xf32>, vector<128x128xf32> -> vector<128x128xf32>
    %c0_11 = arith.constant 0 : index
    %c0_12 = arith.constant 0 : index
    %c0_13 = arith.constant 0 : index
    %10 = vector.load %arg3[%c0_11, %c0_12, %c0_13] : memref<5x1x128xf32, #tpu.memory_space<vmem>>, vector<1x1x128xf32>
    %11 = vector.shape_cast %10 : vector<1x1x128xf32> to vector<1x128xf32>
    %12 = vector.broadcast %11 : vector<1x128xf32> to vector<128x128xf32>
    %13 = arith.addf %9, %12 : vector<128x128xf32>
    %cst_14 = arith.constant 0.000000e+00 : f32
    %14 = vector.broadcast %cst_14 : f32 to vector<128x128xf32>
    %15 = arith.maximumf %13, %14 : vector<128x128xf32>
    %c0_15 = arith.constant 0 : index
    %c0_16 = arith.constant 0 : index
    %16 = vector.load %arg10[%c0_15, %c0_16] : memref<128x128xf32, #tpu.memory_space<vmem>>, vector<128x128xf32>
    tpu.vector_store %arg10[%c0_15, %c0_16], %15 {strides = array<i32>} : memref<128x128xf32, #tpu.memory_space<vmem>>, vector<128x128xf32>,
    %c0_17 = arith.constant 0 : index
    %c0_18 = arith.constant 0 : index
    %17 = vector.load %arg0[%c0_17, %c0_18] : memref<128x128xbf16, #tpu.memory_space<vmem>>, vector<128x128xbf16>
    %c0_19 = arith.constant 0 : index
    %c0_20 = arith.constant 0 : index
    %18 = vector.load %arg10[%c0_19, %c0_20] : memref<128x128xf32, #tpu.memory_space<vmem>>, vector<128x128xf32>
    %19 = arith.truncf %18 : vector<128x128xf32> to vector<128x128xbf16>
    %cst_21 = arith.constant dense<0.000000e+00> : vector<128x128xf32>
    %20 = tpu.matmul %17, %19, %cst_21 {dimension_numbers = #tpu.dot_dimension_numbers<[1], [0], [0], [1], [0, 0, 1, 1], [], []>} : vector<128x128xbf16>, vector<128x128xbf16>, vector<128x128xf32> -> vector<128x128xf32>
    %c1 = arith.constant 1 : index
    %c0_22 = arith.constant 0 : index
    %c0_23 = arith.constant 0 : index
    %21 = vector.load %arg2[%c1, %c0_22, %c0_23] : memref<5x128x128xf32, #tpu.memory_space<vmem>>, vector<1x128x128xf32>
    %22 = vector.shape_cast %21 : vector<1x128x128xf32> to vector<128x128xf32>
    %cst_24 = arith.constant dense<0.000000e+00> : vector<128x128xf32>
    %23 = tpu.matmul %20, %22, %cst_24 {dimension_numbers = #tpu.dot_dimension_numbers<[1], [0], [0], [1], [0, 0, 1, 1], [], []>} : vector<128x128xf32>, vector<128x128xf32>, vector<128x128xf32> -> vector<128x128xf32>
    %c1_25 = arith.constant 1 : index
    %c0_26 = arith.constant 0 : index
    %c0_27 = arith.constant 0 : index
    %24 = vector.load %arg3[%c1_25, %c0_26, %c0_27] : memref<5x1x128xf32, #tpu.memory_space<vmem>>, vector<1x1x128xf32>
    %25 = vector.shape_cast %24 : vector<1x1x128xf32> to vector<1x128xf32>
    %26 = vector.broadcast %25 : vector<1x128xf32> to vector<128x128xf32>
    %27 = arith.addf %23, %26 : vector<128x128xf32>
    %cst_28 = arith.constant 0.000000e+00 : f32
    %28 = vector.broadcast %cst_28 : f32 to vector<128x128xf32>
    %29 = arith.maximumf %27, %28 : vector<128x128xf32>
    %c0_29 = arith.constant 0 : index
    %c0_30 = arith.constant 0 : index
    %30 = vector.load %arg10[%c0_29, %c0_30] : memref<128x128xf32, #tpu.memory_space<vmem>>, vector<128x128xf32>
    tpu.vector_store %arg10[%c0_29, %c0_30], %29 {strides = array<i32>} : memref<128x128xf32, #tpu.memory_space<vmem>>, vector<128x128xf32>,
    %c0_31 = arith.constant 0 : index
    %c0_32 = arith.constant 0 : index
    %31 = vector.load %arg0[%c0_31, %c0_32] : memref<128x128xbf16, #tpu.memory_space<vmem>>, vector<128x128xbf16>
    %c0_33 = arith.constant 0 : index
    %c0_34 = arith.constant 0 : index
    %32 = vector.load %arg10[%c0_33, %c0_34] : memref<128x128xf32, #tpu.memory_space<vmem>>, vector<128x128xf32>
    %33 = arith.truncf %32 : vector<128x128xf32> to vector<128x128xbf16>
    %cst_35 = arith.constant dense<0.000000e+00> : vector<128x128xf32>
    %34 = tpu.matmul %31, %33, %cst_35 {dimension_numbers = #tpu.dot_dimension_numbers<[1], [0], [0], [1], [0, 0, 1, 1], [], []>} : vector<128x128xbf16>, vector<128x128xbf16>, vector<128x128xf32> -> vector<128x128xf32>
    %c2 = arith.constant 2 : index
    %c0_36 = arith.constant 0 : index
    %c0_37 = arith.constant 0 : index
    %35 = vector.load %arg2[%c2, %c0_36, %c0_37] : memref<5x128x128xf32, #tpu.memory_space<vmem>>, vector<1x128x128xf32>
    %36 = vector.shape_cast %35 : vector<1x128x128xf32> to vector<128x128xf32>
    %cst_38 = arith.constant dense<0.000000e+00> : vector<128x128xf32>
    %37 = tpu.matmul %34, %36, %cst_38 {dimension_numbers = #tpu.dot_dimension_numbers<[1], [0], [0], [1], [0, 0, 1, 1], [], []>} : vector<128x128xf32>, vector<128x128xf32>, vector<128x128xf32> -> vector<128x128xf32>
    %c2_39 = arith.constant 2 : index
    %c0_40 = arith.constant 0 : index
    %c0_41 = arith.constant 0 : index
    %38 = vector.load %arg3[%c2_39, %c0_40, %c0_41] : memref<5x1x128xf32, #tpu.memory_space<vmem>>, vector<1x1x128xf32>
    %39 = vector.shape_cast %38 : vector<1x1x128xf32> to vector<1x128xf32>
    %40 = vector.broadcast %39 : vector<1x128xf32> to vector<128x128xf32>
    %41 = arith.addf %37, %40 : vector<128x128xf32>
    %cst_42 = arith.constant 0.000000e+00 : f32
    %42 = vector.broadcast %cst_42 : f32 to vector<128x128xf32>
    %43 = arith.maximumf %41, %42 : vector<128x128xf32>
    %c0_43 = arith.constant 0 : index
    %c0_44 = arith.constant 0 : index
    %44 = vector.load %arg10[%c0_43, %c0_44] : memref<128x128xf32, #tpu.memory_space<vmem>>, vector<128x128xf32>
    tpu.vector_store %arg10[%c0_43, %c0_44], %43 {strides = array<i32>} : memref<128x128xf32, #tpu.memory_space<vmem>>, vector<128x128xf32>,
    %c0_45 = arith.constant 0 : index
    %c0_46 = arith.constant 0 : index
    %45 = vector.load %arg0[%c0_45, %c0_46] : memref<128x128xbf16, #tpu.memory_space<vmem>>, vector<128x128xbf16>
    %c0_47 = arith.constant 0 : index
    %c0_48 = arith.constant 0 : index
    %46 = vector.load %arg10[%c0_47, %c0_48] : memref<128x128xf32, #tpu.memory_space<vmem>>, vector<128x128xf32>
    %47 = arith.truncf %46 : vector<128x128xf32> to vector<128x128xbf16>
    %cst_49 = arith.constant dense<0.000000e+00> : vector<128x128xf32>
    %48 = tpu.matmul %45, %47, %cst_49 {dimension_numbers = #tpu.dot_dimension_numbers<[1], [0], [0], [1], [0, 0, 1, 1], [], []>} : vector<128x128xbf16>, vector<128x128xbf16>, vector<128x128xf32> -> vector<128x128xf32>
    %c3 = arith.constant 3 : index
    %c0_50 = arith.constant 0 : index
    %c0_51 = arith.constant 0 : index
    %49 = vector.load %arg2[%c3, %c0_50, %c0_51] : memref<5x128x128xf32, #tpu.memory_space<vmem>>, vector<1x128x128xf32>
    %50 = vector.shape_cast %49 : vector<1x128x128xf32> to vector<128x128xf32>
    %cst_52 = arith.constant dense<0.000000e+00> : vector<128x128xf32>
    %51 = tpu.matmul %48, %50, %cst_52 {dimension_numbers = #tpu.dot_dimension_numbers<[1], [0], [0], [1], [0, 0, 1, 1], [], []>} : vector<128x128xf32>, vector<128x128xf32>, vector<128x128xf32> -> vector<128x128xf32>
    %c3_53 = arith.constant 3 : index
    %c0_54 = arith.constant 0 : index
    %c0_55 = arith.constant 0 : index
    %52 = vector.load %arg3[%c3_53, %c0_54, %c0_55] : memref<5x1x128xf32, #tpu.memory_space<vmem>>, vector<1x1x128xf32>
    %53 = vector.shape_cast %52 : vector<1x1x128xf32> to vector<1x128xf32>
    %54 = vector.broadcast %53 : vector<1x128xf32> to vector<128x128xf32>
    %55 = arith.addf %51, %54 : vector<128x128xf32>
    %cst_56 = arith.constant 0.000000e+00 : f32
    %56 = vector.broadcast %cst_56 : f32 to vector<128x128xf32>
    %57 = arith.maximumf %55, %56 : vector<128x128xf32>
    %c0_57 = arith.constant 0 : index
    %c0_58 = arith.constant 0 : index
    %58 = vector.load %arg10[%c0_57, %c0_58] : memref<128x128xf32, #tpu.memory_space<vmem>>, vector<128x128xf32>
    tpu.vector_store %arg10[%c0_57, %c0_58], %57 {strides = array<i32>} : memref<128x128xf32, #tpu.memory_space<vmem>>, vector<128x128xf32>,
    %c0_59 = arith.constant 0 : index
    %c0_60 = arith.constant 0 : index
    %59 = vector.load %arg0[%c0_59, %c0_60] : memref<128x128xbf16, #tpu.memory_space<vmem>>, vector<128x128xbf16>
    %c0_61 = arith.constant 0 : index
    %c0_62 = arith.constant 0 : index
    %60 = vector.load %arg10[%c0_61, %c0_62] : memref<128x128xf32, #tpu.memory_space<vmem>>, vector<128x128xf32>
    %61 = arith.truncf %60 : vector<128x128xf32> to vector<128x128xbf16>
    %cst_63 = arith.constant dense<0.000000e+00> : vector<128x128xf32>
    %62 = tpu.matmul %59, %61, %cst_63 {dimension_numbers = #tpu.dot_dimension_numbers<[1], [0], [0], [1], [0, 0, 1, 1], [], []>} : vector<128x128xbf16>, vector<128x128xbf16>, vector<128x128xf32> -> vector<128x128xf32>
    %c4 = arith.constant 4 : index
    %c0_64 = arith.constant 0 : index
    %c0_65 = arith.constant 0 : index
    %63 = vector.load %arg2[%c4, %c0_64, %c0_65] : memref<5x128x128xf32, #tpu.memory_space<vmem>>, vector<1x128x128xf32>
    %64 = vector.shape_cast %63 : vector<1x128x128xf32> to vector<128x128xf32>
    %cst_66 = arith.constant dense<0.000000e+00> : vector<128x128xf32>
    %65 = tpu.matmul %62, %64, %cst_66 {dimension_numbers = #tpu.dot_dimension_numbers<[1], [0], [0], [1], [0, 0, 1, 1], [], []>} : vector<128x128xf32>, vector<128x128xf32>, vector<128x128xf32> -> vector<128x128xf32>
    %c4_67 = arith.constant 4 : index
    %c0_68 = arith.constant 0 : index
    %c0_69 = arith.constant 0 : index
    %66 = vector.load %arg3[%c4_67, %c0_68, %c0_69] : memref<5x1x128xf32, #tpu.memory_space<vmem>>, vector<1x1x128xf32>
    %67 = vector.shape_cast %66 : vector<1x1x128xf32> to vector<1x128xf32>
    %68 = vector.broadcast %67 : vector<1x128xf32> to vector<128x128xf32>
    %69 = arith.addf %65, %68 : vector<128x128xf32>
    %c0_70 = arith.constant 0 : index
    %c0_71 = arith.constant 0 : index
    %70 = vector.load %arg10[%c0_70, %c0_71] : memref<128x128xf32, #tpu.memory_space<vmem>>, vector<128x128xf32>
    tpu.vector_store %arg10[%c0_70, %c0_71], %69 {strides = array<i32>} : memref<128x128xf32, #tpu.memory_space<vmem>>, vector<128x128xf32>,
    %c0_72 = arith.constant 0 : index
    %c0_73 = arith.constant 0 : index
    %71 = vector.load %arg4[%c0_72, %c0_73] : memref<8x128xf32, #tpu.memory_space<vmem>>, vector<8x128xf32>
    %c0_74 = arith.constant 0 : index
    %c0_75 = arith.constant 0 : index
    %72 = vector.load %arg10[%c0_74, %c0_75] : memref<128x128xf32, #tpu.memory_space<vmem>>, vector<128x128xf32>
    %cst_76 = arith.constant dense<0.000000e+00> : vector<8x128xf32>
    %73 = tpu.matmul %71, %72, %cst_76 {dimension_numbers = #tpu.dot_dimension_numbers<[1], [0], [0], [1], [0, 0, 1, 1], [], []>} : vector<8x128xf32>, vector<128x128xf32>, vector<8x128xf32> -> vector<8x128xf32>
    %c0_77 = arith.constant 0 : index
    %c0_78 = arith.constant 0 : index
    %74 = vector.load %arg5[%c0_77, %c0_78] : memref<128x128xf32, #tpu.memory_space<vmem>>, vector<128x128xf32>
    %cst_79 = arith.constant dense<0.000000e+00> : vector<8x128xf32>
    %75 = tpu.matmul %73, %74, %cst_79 {dimension_numbers = #tpu.dot_dimension_numbers<[1], [0], [0], [1], [0, 0, 1, 1], [], []>} : vector<8x128xf32>, vector<128x128xf32>, vector<8x128xf32> -> vector<8x128xf32>
    %c0_80 = arith.constant 0 : index
    %c0_81 = arith.constant 0 : index
    %76 = vector.load %arg6[%c0_80, %c0_81] : memref<1x128xf32, #tpu.memory_space<vmem>>, vector<1x128xf32>
    %77 = vector.broadcast %76 : vector<1x128xf32> to vector<8x128xf32>
    %78 = arith.addf %75, %77 : vector<8x128xf32>
    %cst_82 = arith.constant 0.000000e+00 : f32
    %79 = vector.broadcast %cst_82 : f32 to vector<8x128xf32>
    %80 = arith.maximumf %78, %79 : vector<8x128xf32>
    %c0_83 = arith.constant 0 : index
    %c0_84 = arith.constant 0 : index
    %81 = vector.load %arg7[%c0_83, %c0_84] : memref<128x128xf32, #tpu.memory_space<vmem>>, vector<128x128xf32>
    %cst_85 = arith.constant dense<0.000000e+00> : vector<8x128xf32>
    %82 = tpu.matmul %80, %81, %cst_85 {dimension_numbers = #tpu.dot_dimension_numbers<[1], [0], [0], [1], [0, 0, 1, 1], [], []>} : vector<8x128xf32>, vector<128x128xf32>, vector<8x128xf32> -> vector<8x128xf32>
    %c0_86 = arith.constant 0 : index
    %c0_87 = arith.constant 0 : index
    %83 = vector.load %arg8[%c0_86, %c0_87] : memref<1x128xf32, #tpu.memory_space<vmem>>, vector<1x128xf32>
    %84 = vector.broadcast %83 : vector<1x128xf32> to vector<8x128xf32>
    %85 = arith.addf %82, %84 : vector<8x128xf32>
    %c0_88 = arith.constant 0 : index
    %c0_89 = arith.constant 0 : index
    %86 = vector.load %arg9[%c0_88, %c0_89] : memref<8x128xf32, #tpu.memory_space<vmem>>, vector<8x128xf32>
    tpu.vector_store %arg9[%c0_88, %c0_89], %85 {strides = array<i32>} : memref<8x128xf32, #tpu.memory_space<vmem>>, vector<8x128xf32>,
    return
  }
}

</mosaic_0001>

<llo_original>
// kernel: tpu_custom_call.1
$region0: #{tpu_custom_call.1}
  #allocation0 [shape = 'u32[]', space=smem, size = 0x4, offset = 0x4, fixed_abs, tag = 'smem constant byte address 0x4 - core index']
  #allocation1 [shape = 'u32[144,128]{1,0:T(1,128)}', space=vmem, size = 0x12000, scoped, tag = 'internal scratch']
  #allocation2 [shape = 'f32[128,128]{1,0:T(8,128)}', space=vmem, size = 0x10000, scoped, tag = 'scratch operand']
  %s0 = inlined_call_operand.hbm [shape: bf16[128,128], index: 0, kind: input, shape index: {}]
  %s1 = inlined_call_operand.hbm [shape: bf16[128,128], index: 1, kind: input, shape index: {}]
  %s2 = inlined_call_operand.hbm [shape: f32[5,128,128], index: 2, kind: input, shape index: {}]
  %s3 = inlined_call_operand.vmem [shape: f32[5,1,128], index: 3, kind: input, shape index: {}]
  %s4 = inlined_call_operand.vmem [shape: f32[8,128], index: 4, kind: input, shape index: {}]
  %s5 = inlined_call_operand.hbm [shape: f32[128,128], index: 5, kind: input, shape index: {}]
  %s6 = inlined_call_operand.vmem [shape: f32[1,128], index: 6, kind: input, shape index: {}]
  %s7 = inlined_call_operand.hbm [shape: f32[128,128], index: 7, kind: input, shape index: {}]
  %s8 = inlined_call_operand.vmem [shape: f32[1,128], index: 8, kind: input, shape index: {}]
  %s9 = inlined_call_operand.hbm [shape: f32[8,128], index: 9, kind: output, shape index: {}]
  %s10 = sld [smem:[#allocation0]]
  $region66: #{tpu_custom_call.1} parent=0
    _
  %s12 = ssub.s32 1, %s10
  %s13 = scalar_select 0, %s12, %s10
  $region1: #{tpu_custom_call.1} parent=0
    #allocation3 [shape = 'u8[32768]{0}', space=vmem, size = 0x8000, scoped, tag = 'input window, operand 0, single buffered']
    #allocation4 [shape = 's32[1]{0}', space=sflag, size = 0x4, scoped, tag = 'scoped memory for tpu_custom_call.1']
    #allocation5 [shape = 's32[1]{0}', space=sflag, size = 0x4, scoped, tag = 'scoped memory for tpu_custom_call.1']
    #allocation6 [shape = 'u8[32768]{0}', space=vmem, size = 0x8000, scoped, tag = 'input window, operand 1, single buffered']
    #allocation7 [shape = 's32[1]{0}', space=sflag, size = 0x4, scoped, tag = 'scoped memory for tpu_custom_call.1']
    #allocation8 [shape = 'u8[327680]{0}', space=vmem, size = 0x50000, scoped, tag = 'input window, operand 2, single buffered']
    #allocation9 [shape = 'u8[65536]{0}', space=vmem, size = 0x10000, scoped, tag = 'input window, operand 5, single buffered']
    #allocation10 [shape = 's32[1]{0}', space=sflag, size = 0x4, scoped, tag = 'scoped memory for tpu_custom_call.1']
    #allocation11 [shape = 'u8[65536]{0}', space=vmem, size = 0x10000, scoped, tag = 'input window, operand 7, single buffered']
    #allocation12 [shape = 'u8[4096]{0}', space=vmem, size = 0x1000, scoped, tag = 'output window, operand 0, single buffered']
    %14 = vsyncpa [#allocation4], 0
    %15 = vsyncpa [#allocation7], 0
    %16 = vsyncpa [#allocation10], 0
    %17 = vsyncpa [#allocation5], 0
    // Predicated region
    $region2: #{tpu_custom_call.1} parent=1 // pred_check
      _
    $region3: #{tpu_custom_call.1} parent=1 // pred_check_branch
      %19 = sbr.rel (0) target = $region5
    $region4: #{tpu_custom_call.1} parent=1 // pred_region
      %s21 = ssub.s32 1024, 1024
      %22 = vsyncadd [#allocation4], %s21
      %s23 = sshll.u32 [#allocation3], 4
      %s24 = int_to_ptr.vmem [resolvable:$true] %s23
      %29 = dma.hbm_to_vmem [thread:$0]  %s0, 1024, %s24, [#allocation4], 64, 64, 4
    $region5: #{tpu_custom_call.1} parent=1 // pred_fallthru
      _
    // Predicated region
    $region6: #{tpu_custom_call.1} parent=1 // pred_check
      _
    $region7: #{tpu_custom_call.1} parent=1 // pred_check_branch
      %31 = sbr.rel (0) target = $region9
    $region8: #{tpu_custom_call.1} parent=1 // pred_region
      %s33 = ssub.s32 1024, 1024
      %34 = vsyncadd [#allocation7], %s33
      %s35 = sshll.u32 [#allocation6], 4
      %s36 = int_to_ptr.vmem [resolvable:$true] %s35
      %41 = dma.hbm_to_vmem [thread:$0]  %s1, 1024, %s36, [#allocation7], 64, 64, 4
    $region9: #{tpu_custom_call.1} parent=1 // pred_fallthru
      _
    // Predicated region
    $region10: #{tpu_custom_call.1} parent=1 // pred_check
      _
    $region11: #{tpu_custom_call.1} parent=1 // pred_check_branch
      %43 = sbr.rel (0) target = $region13
    $region12: #{tpu_custom_call.1} parent=1 // pred_region
      %s45 = ssub.s32 10240, 10240
      %46 = vsyncadd [#allocation7], %s45
      %s47 = sshll.u32 [#allocation8], 4
      %s48 = int_to_ptr.vmem [resolvable:$true] %s47
      %53 = dma.hbm_to_vmem [thread:$0]  %s2, 10240, %s48, [#allocation7], 128, 128, 8
    $region13: #{tpu_custom_call.1} parent=1 // pred_fallthru
      _
    // Predicated region
    $region14: #{tpu_custom_call.1} parent=1 // pred_check
      _
    $region15: #{tpu_custom_call.1} parent=1 // pred_check_branch
      %55 = sbr.rel (0) target = $region17
    $region16: #{tpu_custom_call.1} parent=1 // pred_region
      _
    $region17: #{tpu_custom_call.1} parent=1 // pred_fallthru
      _
    // Predicated region
    $region18: #{tpu_custom_call.1} parent=1 // pred_check
      _
    $region19: #{tpu_custom_call.1} parent=1 // pred_check_branch
      %57 = sbr.rel (0) target = $region21
    $region20: #{tpu_custom_call.1} parent=1 // pred_region
      _
    $region21: #{tpu_custom_call.1} parent=1 // pred_fallthru
      _
    // Predicated region
    $region22: #{tpu_custom_call.1} parent=1 // pred_check
      _
    $region23: #{tpu_custom_call.1} parent=1 // pred_check_branch
      %59 = sbr.rel (0) target = $region25
    $region24: #{tpu_custom_call.1} parent=1 // pred_region
      %s61 = ssub.s32 2048, 2048
      %62 = vsyncadd [#allocation10], %s61
      %s63 = sshll.u32 [#allocation9], 4
      %s64 = int_to_ptr.vmem [resolvable:$true] %s63
      %69 = dma.hbm_to_vmem [thread:$0]  %s5, 2048, %s64, [#allocation10], 128, 128, 8
    $region25: #{tpu_custom_call.1} parent=1 // pred_fallthru
      _
    // Predicated region
    $region26: #{tpu_custom_call.1} parent=1 // pred_check
      _
    $region27: #{tpu_custom_call.1} parent=1 // pred_check_branch
      %71 = sbr.rel (0) target = $region29
    $region28: #{tpu_custom_call.1} parent=1 // pred_region
      _
    $region29: #{tpu_custom_call.1} parent=1 // pred_fallthru
      _
    // Predicated region
    $region30: #{tpu_custom_call.1} parent=1 // pred_check
      _
    $region31: #{tpu_custom_call.1} parent=1 // pred_check_branch
      %73 = sbr.rel (0) target = $region33
    $region32: #{tpu_custom_call.1} parent=1 // pred_region
      %s75 = ssub.s32 2048, 2048
      %76 = vsyncadd [#allocation10], %s75
      %s77 = sshll.u32 [#allocation11], 4
      %s78 = int_to_ptr.vmem [resolvable:$true] %s77
      %83 = dma.hbm_to_vmem [thread:$0]  %s7, 2048, %s78, [#allocation10], 128, 128, 8
    $region33: #{tpu_custom_call.1} parent=1 // pred_fallthru
      _
    // Predicated region
    $region34: #{tpu_custom_call.1} parent=1 // pred_check
      _
    $region35: #{tpu_custom_call.1} parent=1 // pred_check_branch
      %85 = sbr.rel (0) target = $region37
    $region36: #{tpu_custom_call.1} parent=1 // pred_region
      _
    $region37: #{tpu_custom_call.1} parent=1 // pred_fallthru
      _
    // Predicated region
    $region38: #{tpu_custom_call.1} parent=1 // pred_check
      _
    $region39: #{tpu_custom_call.1} parent=1 // pred_check_branch
      %87 = sbr.rel (0) target = $region41
    $region40: #{tpu_custom_call.1} parent=1 // pred_region
      %88 = dma.done [#allocation4], 1024
    $region41: #{tpu_custom_call.1} parent=1 // pred_fallthru
      _
    // Predicated region
    $region42: #{tpu_custom_call.1} parent=1 // pred_check
      _
    $region43: #{tpu_custom_call.1} parent=1 // pred_check_branch
      %90 = sbr.rel (0) target = $region45
    $region44: #{tpu_custom_call.1} parent=1 // pred_region
      %91 = dma.done [#allocation7], 1024
    $region45: #{tpu_custom_call.1} parent=1 // pred_fallthru
      _
    // Predicated region
    $region46: #{tpu_custom_call.1} parent=1 // pred_check
      _
    $region47: #{tpu_custom_call.1} parent=1 // pred_check_branch
      %93 = sbr.rel (0) target = $region49
    $region48: #{tpu_custom_call.1} parent=1 // pred_region
      %94 = dma.done [#allocation7], 10240
    $region49: #{tpu_custom_call.1} parent=1 // pred_fallthru
      _
    // Predicated region
    $region50: #{tpu_custom_call.1} parent=1 // pred_check
      _
    $region51: #{tpu_custom_call.1} parent=1 // pred_check_branch
      %96 = sbr.rel (0) target = $region53
    $region52: #{tpu_custom_call.1} parent=1 // pred_region
      %97 = dma.done [#allocation10], 2048
    $region53: #{tpu_custom_call.1} parent=1 // pred_fallthru
      _
    // Predicated region
    $region54: #{tpu_custom_call.1} parent=1 // pred_check
      _
    $region55: #{tpu_custom_call.1} parent=1 // pred_check_branch
      %99 = sbr.rel (0) target = $region57
    $region56: #{tpu_custom_call.1} parent=1 // pred_region
      %100 = dma.done [#allocation10], 2048
    $region57: #{tpu_custom_call.1} parent=1 // pred_fallthru
      _
    %v102 = vld [vmem:[#allocation6] sm:$0xf]
    %v103 = vld [vmem:[#allocation6 + $0x4] sm:$0xf]
    %v104 = vld [vmem:[#allocation6 + $0x8] sm:$0xf]
    %v105 = vld [vmem:[#allocation6 + $0xc] sm:$0xf]
    %v106 = vld [vmem:[#allocation6 + $0x10] sm:$0xf]
    %v107 = vld [vmem:[#allocation6 + $0x14] sm:$0xf]
    %v108 = vld [vmem:[#allocation6 + $0x18] sm:$0xf]
    %v109 = vld [vmem:[#allocation6 + $0x1c] sm:$0xf]
    %v110 = vld [vmem:[#allocation6 + $0x20] sm:$0xf]
    %v111 = vld [vmem:[#allocation6 + $0x24] sm:$0xf]
    %v112 = vld [vmem:[#allocation6 + $0x28] sm:$0xf]
    %v113 = vld [vmem:[#allocation6 + $0x2c] sm:$0xf]
    %v114 = vld [vmem:[#allocation6 + $0x30] sm:$0xf]
    %v115 = vld [vmem:[#allocation6 + $0x34] sm:$0xf]
    %v116 = vld [vmem:[#allocation6 + $0x38] sm:$0xf]
    %v117 = vld [vmem:[#allocation6 + $0x3c] sm:$0xf]
    %v118 = vunpack.c.l.bf16 %v102
    %v119 = vunpack.c.l.bf16 %v103
    %v120 = vunpack.c.l.bf16 %v104
    %v121 = vunpack.c.l.bf16 %v105
    %v122 = vunpack.c.l.bf16 %v106
    %v123 = vunpack.c.l.bf16 %v107
    %v124 = vunpack.c.l.bf16 %v108
    %v125 = vunpack.c.l.bf16 %v109
    %v126 = vunpack.c.l.bf16 %v110
    %v127 = vunpack.c.l.bf16 %v111
    %v128 = vunpack.c.l.bf16 %v112
    %v129 = vunpack.c.l.bf16 %v113
    %v130 = vunpack.c.l.bf16 %v114
    %v131 = vunpack.c.l.bf16 %v115
    %v132 = vunpack.c.l.bf16 %v116
    %v133 = vunpack.c.l.bf16 %v117
    %134 = vst [vmem:[#allocation2] sm:$0xff] %v118
    %135 = vst [vmem:[#allocation2 + $0x8] sm:$0xff] %v119
    %136 = vst [vmem:[#allocation2 + $0x10] sm:$0xff] %v120
    %137 = vst [vmem:[#allocation2 + $0x18] sm:$0xff] %v121
    %138 = vst [vmem:[#allocation2 + $0x20] sm:$0xff] %v122
    %139 = vst [vmem:[#allocation2 + $0x28] sm:$0xff] %v123
    %140 = vst [vmem:[#allocation2 + $0x30] sm:$0xff] %v124
    %141 = vst [vmem:[#allocation2 + $0x38] sm:$0xff] %v125
    %142 = vst [vmem:[#allocation2 + $0x40] sm:$0xff] %v126
    %143 = vst [vmem:[#allocation2 + $0x48] sm:$0xff] %v127
    %144 = vst [vmem:[#allocation2 + $0x50] sm:$0xff] %v128
    %145 = vst [vmem:[#allocation2 + $0x58] sm:$0xff] %v129
    %146 = vst [vmem:[#allocation2 + $0x60] sm:$0xff] %v130
    %147 = vst [vmem:[#allocation2 + $0x68] sm:$0xff] %v131
    %148 = vst [vmem:[#allocation2 + $0x70] sm:$0xff] %v132
    %149 = vst [vmem:[#allocation2 + $0x78] sm:$0xff] %v133
    %v150 = vld [vmem:[#allocation3] sm:$0xf]
    %v151 = vld [vmem:[#allocation3 + $0x4] sm:$0xf]
    %v152 = vld [vmem:[#allocation3 + $0x8] sm:$0xf]
    %v153 = vld [vmem:[#allocation3 + $0xc] sm:$0xf]
    %v154 = vld [vmem:[#allocation3 + $0x10] sm:$0xf]
    %v155 = vld [vmem:[#allocation3 + $0x14] sm:$0xf]
    %v156 = vld [vmem:[#allocation3 + $0x18] sm:$0xf]
    %v157 = vld [vmem:[#allocation3 + $0x1c] sm:$0xf]
    %v158 = vld [vmem:[#allocation3 + $0x20] sm:$0xf]
    %v159 = vld [vmem:[#allocation3 + $0x24] sm:$0xf]
    %v160 = vld [vmem:[#allocation3 + $0x28] sm:$0xf]
    %v161 = vld [vmem:[#allocation3 + $0x2c] sm:$0xf]
    %v162 = vld [vmem:[#allocation3 + $0x30] sm:$0xf]
    %v163 = vld [vmem:[#allocation3 + $0x34] sm:$0xf]
    %v164 = vld [vmem:[#allocation3 + $0x38] sm:$0xf]
    %v165 = vld [vmem:[#allocation3 + $0x3c] sm:$0xf]
    %v166 = vld [vmem:[#allocation2] sm:$0xff]
    %v167 = vld [vmem:[#allocation2 + $0x8] sm:$0xff]
    %v168 = vld [vmem:[#allocation2 + $0x10] sm:$0xff]
    %v169 = vld [vmem:[#allocation2 + $0x18] sm:$0xff]
    %v170 = vld [vmem:[#allocation2 + $0x20] sm:$0xff]
    %v171 = vld [vmem:[#allocation2 + $0x28] sm:$0xff]
    %v172 = vld [vmem:[#allocation2 + $0x30] sm:$0xff]
    %v173 = vld [vmem:[#allocation2 + $0x38] sm:$0xff]
    %v174 = vld [vmem:[#allocation2 + $0x40] sm:$0xff]
    %v175 = vld [vmem:[#allocation2 + $0x48] sm:$0xff]
    %v176 = vld [vmem:[#allocation2 + $0x50] sm:$0xff]
    %v177 = vld [vmem:[#allocation2 + $0x58] sm:$0xff]
    %v178 = vld [vmem:[#allocation2 + $0x60] sm:$0xff]
    %v179 = vld [vmem:[#allocation2 + $0x68] sm:$0xff]
    %v180 = vld [vmem:[#allocation2 + $0x70] sm:$0xff]
    %v181 = vld [vmem:[#allocation2 + $0x78] sm:$0xff]
    %v182 = vpack.c.bf16 %v167, %v166
    %v183 = vpack.c.bf16 %v169, %v168
    %v184 = vpack.c.bf16 %v171, %v170
    %v185 = vpack.c.bf16 %v173, %v172
    %v186 = vpack.c.bf16 %v175, %v174
    %v187 = vpack.c.bf16 %v177, %v176
    %v188 = vpack.c.bf16 %v179, %v178
    %v189 = vpack.c.bf16 %v181, %v180
    %v206 = vunpack.c.l.b16 %v150
    %v207 = vunpack.c.l.b16 %v151
    %v208 = vunpack.c.l.b16 %v152
    %v209 = vunpack.c.l.b16 %v153
    %v210 = vunpack.c.l.b16 %v154
    %v211 = vunpack.c.l.b16 %v155
    %v212 = vunpack.c.l.b16 %v156
    %v213 = vunpack.c.l.b16 %v157
    %v214 = vunpack.c.l.b16 %v158
    %v215 = vunpack.c.l.b16 %v159
    %v216 = vunpack.c.l.b16 %v160
    %v217 = vunpack.c.l.b16 %v161
    %v218 = vunpack.c.l.b16 %v162
    %v219 = vunpack.c.l.b16 %v163
    %v220 = vunpack.c.l.b16 %v164
    %v221 = vunpack.c.l.b16 %v165
    %v222 = vpack.c.b16 %v207, %v206
    %v223 = vpack.c.b16 %v209, %v208
    %v224 = vpack.c.b16 %v211, %v210
    %v225 = vpack.c.b16 %v213, %v212
    %v226 = vpack.c.b16 %v215, %v214
    %v227 = vpack.c.b16 %v217, %v216
    %v228 = vpack.c.b16 %v219, %v218
    %v229 = vpack.c.b16 %v221, %v220
    %238 = vmatprep.subr.bf16.mxu0 0
    %239 = vmatpush1.bf16.msra.mxu0 %v182
    %240 = vmatprep.subr.bf16.mxu0 0
    %241 = vmatpush1.bf16.msra.mxu0 %v183
    %242 = vmatprep.subr.bf16.mxu0 0
    %243 = vmatpush1.bf16.msra.mxu0 %v184
    %244 = vmatprep.subr.bf16.mxu0 0
    %245 = vmatpush1.bf16.msra.mxu0 %v185
    %246 = vmatprep.subr.bf16.mxu0 0
    %247 = vmatpush1.bf16.msra.mxu0 %v186
    %248 = vmatprep.subr.bf16.mxu0 0
    %249 = vmatpush1.bf16.msra.mxu0 %v187
    %250 = vmatprep.subr.bf16.mxu0 0
    %251 = vmatpush1.bf16.msra.mxu0 %v188
    %252 = vmatprep.subr.bf16.mxu0 0
    %253 = vmatpush1.bf16.msra.mxu0 %v189
    %254 = vmatprep.subr.bf16.mxu0 0
    %255 = vmatpush1.bf16.msra.mxu0 0
    %256 = vmatprep.subr.bf16.mxu0 0
    %257 = vmatpush1.bf16.msra.mxu0 0
    %258 = vmatprep.subr.bf16.mxu0 0
    %259 = vmatpush1.bf16.msra.mxu0 0
    %260 = vmatprep.subr.bf16.mxu0 0
    %261 = vmatpush1.bf16.msra.mxu0 0
    %262 = vmatprep.subr.bf16.mxu0 0
    %263 = vmatpush1.bf16.msra.mxu0 0
    %264 = vmatprep.subr.bf16.mxu0 0
    %265 = vmatpush1.bf16.msra.mxu0 0
    %266 = vmatprep.subr.bf16.mxu0 0
    %267 = vmatpush1.bf16.msra.mxu0 0
    %268 = vmatprep.subr.bf16.mxu0 0
    %269 = vmatpush1.bf16.msra.mxu0 0
    %270 = vmatprep.mubr.bf16.mxu0 0
    %271 = vmatmul.mubr.bf16.gmra.mrb[0].mxu0 %v222
    %v272 = vpop.f32.mrb[0].mxu0
    %v273 = vadd.f32 0.0, %v272
    %v274 = vpop.f32.mrb[0].mxu0
    %v275 = vpop.f32.mrb[0].mxu0
    %v276 = vadd.f32 0.0, %v275
    %v277 = vpop.f32.mrb[0].mxu0
    %278 = vmatprep.mubr.bf16.mxu0 0
    %279 = vmatmul.mubr.bf16.gmra.mrb[0].mxu0 %v223
    %v280 = vpop.f32.mrb[0].mxu0
    %v281 = vadd.f32 0.0, %v280
    %v282 = vpop.f32.mrb[0].mxu0
    %v283 = vpop.f32.mrb[0].mxu0
    %v284 = vadd.f32 0.0, %v283
    %v285 = vpop.f32.mrb[0].mxu0
    %286 = vmatprep.mubr.bf16.mxu0 0
    %287 = vmatmul.mubr.bf16.gmra.mrb[0].mxu0 %v224
    %v288 = vpop.f32.mrb[0].mxu0
    %v289 = vadd.f32 0.0, %v288
    %v290 = vpop.f32.mrb[0].mxu0
    %v291 = vpop.f32.mrb[0].mxu0
    %v292 = vadd.f32 0.0, %v291
    %v293 = vpop.f32.mrb[0].mxu0
    %294 = vmatprep.mubr.bf16.mxu0 0
    %295 = vmatmul.mubr.bf16.gmra.mrb[0].mxu0 %v225
    %v296 = vpop.f32.mrb[0].mxu0
    %v297 = vadd.f32 0.0, %v296
    %v298 = vpop.f32.mrb[0].mxu0
    %v299 = vpop.f32.mrb[0].mxu0
    %v300 = vadd.f32 0.0, %v299
    %v301 = vpop.f32.mrb[0].mxu0
    %302 = vmatprep.mubr.bf16.mxu0 0
    %303 = vmatmul.mubr.bf16.gmra.mrb[0].mxu0 %v226
    %v304 = vpop.f32.mrb[0].mxu0
    %v305 = vadd.f32 0.0, %v304
    %v306 = vpop.f32.mrb[0].mxu0
    %v307 = vpop.f32.mrb[0].mxu0
    %v308 = vadd.f32 0.0, %v307
    %v309 = vpop.f32.mrb[0].mxu0
    %310 = vmatprep.mubr.bf16.mxu0 0
    %311 = vmatmul.mubr.bf16.gmra.mrb[0].mxu0 %v227
    %v312 = vpop.f32.mrb[0].mxu0
    %v313 = vadd.f32 0.0, %v312
    %v314 = vpop.f32.mrb[0].mxu0
    %v315 = vpop.f32.mrb[0].mxu0
    %v316 = vadd.f32 0.0, %v315
    %v317 = vpop.f32.mrb[0].mxu0
    %318 = vmatprep.mubr.bf16.mxu0 0
    %319 = vmatmul.mubr.bf16.gmra.mrb[0].mxu0 %v228
    %v320 = vpop.f32.mrb[0].mxu0
    %v321 = vadd.f32 0.0, %v320
    %v322 = vpop.f32.mrb[0].mxu0
    %v323 = vpop.f32.mrb[0].mxu0
    %v324 = vadd.f32 0.0, %v323
    %v325 = vpop.f32.mrb[0].mxu0
    %326 = vmatprep.mubr.bf16.mxu0 0
    %327 = vmatmul.mubr.bf16.gmra.mrb[0].mxu0 %v229
    %v328 = vpop.f32.mrb[0].mxu0
    %v329 = vadd.f32 0.0, %v328
    %v330 = vpop.f32.mrb[0].mxu0
    %v331 = vpop.f32.mrb[0].mxu0
    %v332 = vadd.f32 0.0, %v331
    %v333 = vpop.f32.mrb[0].mxu0
    %334 = vdwg.mxu0
    %v335 = vld [vmem:[#allocation8] sm:$0xff]
    %v336 = vld [vmem:[#allocation8 + $0x8] sm:$0xff]
    %v337 = vld [vmem:[#allocation8 + $0x10] sm:$0xff]
    %v338 = vld [vmem:[#allocation8 + $0x18] sm:$0xff]
    %v339 = vld [vmem:[#allocation8 + $0x20] sm:$0xff]
    %v340 = vld [vmem:[#allocation8 + $0x28] sm:$0xff]
    %v341 = vld [vmem:[#allocation8 + $0x30] sm:$0xff]
    %v342 = vld [vmem:[#allocation8 + $0x38] sm:$0xff]
    %v343 = vld [vmem:[#allocation8 + $0x40] sm:$0xff]
    %v344 = vld [vmem:[#allocation8 + $0x48] sm:$0xff]
    %v345 = vld [vmem:[#allocation8 + $0x50] sm:$0xff]
    %v346 = vld [vmem:[#allocation8 + $0x58] sm:$0xff]
    %v347 = vld [vmem:[#allocation8 + $0x60] sm:$0xff]
    %v348 = vld [vmem:[#allocation8 + $0x68] sm:$0xff]
    %v349 = vld [vmem:[#allocation8 + $0x70] sm:$0xff]
    %v350 = vld [vmem:[#allocation8 + $0x78] sm:$0xff]
    %v351 = vld [vmem:[%s3] sm:$0x1]
    %v353 = vlaneseq
    %v354 = vshrl.u32 %v353, 7
    %v355 = vsub.s32 0, %v354
    %v356 = vrot.slane %v351, %v355
    %358 = vmatprep.subr.mxu0 0.0
    %359 = vmatpush1.msra.mxu0 %v335
    %360 = vmatprep.subr.mxu0 0.0
    %361 = vmatpush1.msra.mxu0 %v336
    %362 = vmatprep.subr.mxu0 0.0
    %363 = vmatpush1.msra.mxu0 %v337
    %364 = vmatprep.subr.mxu0 0.0
    %365 = vmatpush1.msra.mxu0 %v338
    %366 = vmatprep.subr.mxu0 0.0
    %367 = vmatpush1.msra.mxu0 %v339
    %368 = vmatprep.subr.mxu0 0.0
    %369 = vmatpush1.msra.mxu0 %v340
    %370 = vmatprep.subr.mxu0 0.0
    %371 = vmatpush1.msra.mxu0 %v341
    %372 = vmatprep.subr.mxu0 0.0
    %373 = vmatpush1.msra.mxu0 %v342
    %374 = vmatprep.subr.mxu0 0.0
    %375 = vmatpush1.msra.mxu0 %v343
    %376 = vmatprep.subr.mxu0 0.0
    %377 = vmatpush1.msra.mxu0 %v344
    %378 = vmatprep.subr.mxu0 0.0
    %379 = vmatpush1.msra.mxu0 %v345
    %380 = vmatprep.subr.mxu0 0.0
    %381 = vmatpush1.msra.mxu0 %v346
    %382 = vmatprep.subr.mxu0 0.0
    %383 = vmatpush1.msra.mxu0 %v347
    %384 = vmatprep.subr.mxu0 0.0
    %385 = vmatpush1.msra.mxu0 %v348
    %386 = vmatprep.subr.mxu0 0.0
    %387 = vmatpush1.msra.mxu0 %v349
    %388 = vmatprep.subr.mxu0 0.0
    %389 = vmatpush1.msra.mxu0 %v350
    %390 = vmatprep.subr.mxu0 0.0
    %391 = vmatpush1.msra.mxu0 0.0
    %392 = vmatprep.subr.mxu0 0.0
    %393 = vmatpush1.msra.mxu0 0.0
    %394 = vmatprep.subr.mxu0 0.0
    %395 = vmatpush1.msra.mxu0 0.0
    %396 = vmatprep.subr.mxu0 0.0
    %397 = vmatpush1.msra.mxu0 0.0
    %398 = vmatprep.subr.mxu0 0.0
    %399 = vmatpush1.msra.mxu0 0.0
    %400 = vmatprep.subr.mxu0 0.0
    %401 = vmatpush1.msra.mxu0 0.0
    %402 = vmatprep.subr.mxu0 0.0
    %403 = vmatpush1.msra.mxu0 0.0
    %404 = vmatprep.subr.mxu0 0.0
    %405 = vmatpush1.msra.mxu0 0.0
    %406 = vmatprep.subr.mxu0 0.0
    %407 = vmatpush1.msra.mxu0 0.0
    %408 = vmatprep.subr.mxu0 0.0
    %409 = vmatpush1.msra.mxu0 0.0
    %410 = vmatprep.subr.mxu0 0.0
    %411 = vmatpush1.msra.mxu0 0.0
    %412 = vmatprep.subr.mxu0 0.0
    %413 = vmatpush1.msra.mxu0 0.0
    %414 = vmatprep.subr.mxu0 0.0
    %415 = vmatpush1.msra.mxu0 0.0
    %416 = vmatprep.subr.mxu0 0.0
    %417 = vmatpush1.msra.mxu0 0.0
    %418 = vmatprep.subr.mxu0 0.0
    %419 = vmatpush1.msra.mxu0 0.0
    %420 = vmatprep.subr.mxu0 0.0
    %421 = vmatpush1.msra.mxu0 0.0
    %422 = vmatprep.mubr.f32.mxu0 0.0
    %423 = vmatmul.mubr.f32.gmra.mrb[0].mxu0 %v273
    %v424 = vpop.f32.mrb[0].mxu0
    %v425 = vadd.f32 %v356, %v424
    %v426 = vpop.f32.mrb[0].mxu0
    %427 = vmatprep.mubr.f32.mxu0 0.0
    %428 = vmatmul.mubr.f32.gmra.mrb[0].mxu0 %v276
    %v429 = vpop.f32.mrb[0].mxu0
    %v430 = vadd.f32 %v356, %v429
    %v431 = vpop.f32.mrb[0].mxu0
    %432 = vmatprep.mubr.f32.mxu0 0.0
    %433 = vmatmul.mubr.f32.gmra.mrb[0].mxu0 %v281
    %v434 = vpop.f32.mrb[0].mxu0
    %v435 = vadd.f32 %v356, %v434
    %v436 = vpop.f32.mrb[0].mxu0
    %437 = vmatprep.mubr.f32.mxu0 0.0
    %438 = vmatmul.mubr.f32.gmra.mrb[0].mxu0 %v284
    %v439 = vpop.f32.mrb[0].mxu0
    %v440 = vadd.f32 %v356, %v439
    %v441 = vpop.f32.mrb[0].mxu0
    %442 = vmatprep.mubr.f32.mxu0 0.0
    %443 = vmatmul.mubr.f32.gmra.mrb[0].mxu0 %v289
    %v444 = vpop.f32.mrb[0].mxu0
    %v445 = vadd.f32 %v356, %v444
    %v446 = vpop.f32.mrb[0].mxu0
    %447 = vmatprep.mubr.f32.mxu0 0.0
    %448 = vmatmul.mubr.f32.gmra.mrb[0].mxu0 %v292
    %v449 = vpop.f32.mrb[0].mxu0
    %v450 = vadd.f32 %v356, %v449
    %v451 = vpop.f32.mrb[0].mxu0
    %452 = vmatprep.mubr.f32.mxu0 0.0
    %453 = vmatmul.mubr.f32.gmra.mrb[0].mxu0 %v297
    %v454 = vpop.f32.mrb[0].mxu0
    %v455 = vadd.f32 %v356, %v454
    %v456 = vpop.f32.mrb[0].mxu0
    %457 = vmatprep.mubr.f32.mxu0 0.0
    %458 = vmatmul.mubr.f32.gmra.mrb[0].mxu0 %v300
    %v459 = vpop.f32.mrb[0].mxu0
    %v460 = vadd.f32 %v356, %v459
    %v461 = vpop.f32.mrb[0].mxu0
    %462 = vmatprep.mubr.f32.mxu0 0.0
    %463 = vmatmul.mubr.f32.gmra.mrb[0].mxu0 %v305
    %v464 = vpop.f32.mrb[0].mxu0
    %v465 = vadd.f32 %v356, %v464
    %v466 = vpop.f32.mrb[0].mxu0
    %467 = vmatprep.mubr.f32.mxu0 0.0
    %468 = vmatmul.mubr.f32.gmra.mrb[0].mxu0 %v308
    %v469 = vpop.f32.mrb[0].mxu0
    %v470 = vadd.f32 %v356, %v469
    %v471 = vpop.f32.mrb[0].mxu0
    %472 = vmatprep.mubr.f32.mxu0 0.0
    %473 = vmatmul.mubr.f32.gmra.mrb[0].mxu0 %v313
    %v474 = vpop.f32.mrb[0].mxu0
    %v475 = vadd.f32 %v356, %v474
    %v476 = vpop.f32.mrb[0].mxu0
    %477 = vmatprep.mubr.f32.mxu0 0.0
    %478 = vmatmul.mubr.f32.gmra.mrb[0].mxu0 %v316
    %v479 = vpop.f32.mrb[0].mxu0
    %v480 = vadd.f32 %v356, %v479
    %v481 = vpop.f32.mrb[0].mxu0
    %482 = vmatprep.mubr.f32.mxu0 0.0
    %483 = vmatmul.mubr.f32.gmra.mrb[0].mxu0 %v321
    %v484 = vpop.f32.mrb[0].mxu0
    %v485 = vadd.f32 %v356, %v484
    %v486 = vpop.f32.mrb[0].mxu0
    %487 = vmatprep.mubr.f32.mxu0 0.0
    %488 = vmatmul.mubr.f32.gmra.mrb[0].mxu0 %v324
    %v489 = vpop.f32.mrb[0].mxu0
    %v490 = vadd.f32 %v356, %v489
    %v491 = vpop.f32.mrb[0].mxu0
    %492 = vmatprep.mubr.f32.mxu0 0.0
    %493 = vmatmul.mubr.f32.gmra.mrb[0].mxu0 %v329
    %v494 = vpop.f32.mrb[0].mxu0
    %v495 = vadd.f32 %v356, %v494
    %v496 = vpop.f32.mrb[0].mxu0
    %497 = vmatprep.mubr.f32.mxu0 0.0
    %498 = vmatmul.mubr.f32.gmra.mrb[0].mxu0 %v332
    %v499 = vpop.f32.mrb[0].mxu0
    %v500 = vadd.f32 %v356, %v499
    %v501 = vpop.f32.mrb[0].mxu0
    %502 = vdwg.mxu0
    %v503 = vmax.f32 %v425, 0.0
    %v504 = vmax.f32 %v430, 0.0
    %v505 = vmax.f32 %v435, 0.0
    %v506 = vmax.f32 %v440, 0.0
    %v507 = vmax.f32 %v445, 0.0
    %v508 = vmax.f32 %v450, 0.0
    %v509 = vmax.f32 %v455, 0.0
    %v510 = vmax.f32 %v460, 0.0
    %v511 = vmax.f32 %v465, 0.0
    %v512 = vmax.f32 %v470, 0.0
    %v513 = vmax.f32 %v475, 0.0
    %v514 = vmax.f32 %v480, 0.0
    %v515 = vmax.f32 %v485, 0.0
    %v516 = vmax.f32 %v490, 0.0
    %v517 = vmax.f32 %v495, 0.0
    %v518 = vmax.f32 %v500, 0.0
    %519 = vst [vmem:[#allocation2] sm:$0xff] %v503
    %520 = vst [vmem:[#allocation2 + $0x8] sm:$0xff] %v504
    %521 = vst [vmem:[#allocation2 + $0x10] sm:$0xff] %v505
    %522 = vst [vmem:[#allocation2 + $0x18] sm:$0xff] %v506
    %523 = vst [vmem:[#allocation2 + $0x20] sm:$0xff] %v507
    %524 = vst [vmem:[#allocation2 + $0x28] sm:$0xff] %v508
    %525 = vst [vmem:[#allocation2 + $0x30] sm:$0xff] %v509
    %526 = vst [vmem:[#allocation2 + $0x38] sm:$0xff] %v510
    %527 = vst [vmem:[#allocation2 + $0x40] sm:$0xff] %v511
    %528 = vst [vmem:[#allocation2 + $0x48] sm:$0xff] %v512
    %529 = vst [vmem:[#allocation2 + $0x50] sm:$0xff] %v513
    %530 = vst [vmem:[#allocation2 + $0x58] sm:$0xff] %v514
    %531 = vst [vmem:[#allocation2 + $0x60] sm:$0xff] %v515
    %532 = vst [vmem:[#allocation2 + $0x68] sm:$0xff] %v516
    %533 = vst [vmem:[#allocation2 + $0x70] sm:$0xff] %v517
    %534 = vst [vmem:[#allocation2 + $0x78] sm:$0xff] %v518
    %v535 = vld [vmem:[#allocation3] sm:$0xf]
    %v536 = vld [vmem:[#allocation3 + $0x4] sm:$0xf]
    %v537 = vld [vmem:[#allocation3 + $0x8] sm:$0xf]
    %v538 = vld [vmem:[#allocation3 + $0xc] sm:$0xf]
    %v539 = vld [vmem:[#allocation3 + $0x10] sm:$0xf]
    %v540 = vld [vmem:[#allocation3 + $0x14] sm:$0xf]
    %v541 = vld [vmem:[#allocation3 + $0x18] sm:$0xf]
    %v542 = vld [vmem:[#allocation3 + $0x1c] sm:$0xf]
    %v543 = vld [vmem:[#allocation3 + $0x20] sm:$0xf]
    %v544 = vld [vmem:[#allocation3 + $0x24] sm:$0xf]
    %v545 = vld [vmem:[#allocation3 + $0x28] sm:$0xf]
    %v546 = vld [vmem:[#allocation3 + $0x2c] sm:$0xf]
    %v547 = vld [vmem:[#allocation3 + $0x30] sm:$0xf]
    %v548 = vld [vmem:[#allocation3 + $0x34] sm:$0xf]
    %v549 = vld [vmem:[#allocation3 + $0x38] sm:$0xf]
    %v550 = vld [vmem:[#allocation3 + $0x3c] sm:$0xf]
    %v551 = vld [vmem:[#allocation2] sm:$0xff]
    %v552 = vld [vmem:[#allocation2 + $0x8] sm:$0xff]
    %v553 = vld [vmem:[#allocation2 + $0x10] sm:$0xff]
    %v554 = vld [vmem:[#allocation2 + $0x18] sm:$0xff]
    %v555 = vld [vmem:[#allocation2 + $0x20] sm:$0xff]
    %v556 = vld [vmem:[#allocation2 + $0x28] sm:$0xff]
    %v557 = vld [vmem:[#allocation2 + $0x30] sm:$0xff]
    %v558 = vld [vmem:[#allocation2 + $0x38] sm:$0xff]
    %v559 = vld [vmem:[#allocation2 + $0x40] sm:$0xff]
    %v560 = vld [vmem:[#allocation2 + $0x48] sm:$0xff]
    %v561 = vld [vmem:[#allocation2 + $0x50] sm:$0xff]
    %v562 = vld [vmem:[#allocation2 + $0x58] sm:$0xff]
    %v563 = vld [vmem:[#allocation2 + $0x60] sm:$0xff]
    %v564 = vld [vmem:[#allocation2 + $0x68] sm:$0xff]
    %v565 = vld [vmem:[#allocation2 + $0x70] sm:$0xff]
    %v566 = vld [vmem:[#allocation2 + $0x78] sm:$0xff]
    %v567 = vpack.c.bf16 %v552, %v551
    %v568 = vpack.c.bf16 %v554, %v553
    %v569 = vpack.c.bf16 %v556, %v555
    %v570 = vpack.c.bf16 %v558, %v557
    %v571 = vpack.c.bf16 %v560, %v559
    %v572 = vpack.c.bf16 %v562, %v561
    %v573 = vpack.c.bf16 %v564, %v563
    %v574 = vpack.c.bf16 %v566, %v565
    %v591 = vunpack.c.l.b16 %v535
    %v592 = vunpack.c.l.b16 %v536
    %v593 = vunpack.c.l.b16 %v537
    %v594 = vunpack.c.l.b16 %v538
    %v595 = vunpack.c.l.b16 %v539
    %v596 = vunpack.c.l.b16 %v540
    %v597 = vunpack.c.l.b16 %v541
    %v598 = vunpack.c.l.b16 %v542
    %v599 = vunpack.c.l.b16 %v543
    %v600 = vunpack.c.l.b16 %v544
    %v601 = vunpack.c.l.b16 %v545
    %v602 = vunpack.c.l.b16 %v546
    %v603 = vunpack.c.l.b16 %v547
    %v604 = vunpack.c.l.b16 %v548
    %v605 = vunpack.c.l.b16 %v549
    %v606 = vunpack.c.l.b16 %v550
    %v607 = vpack.c.b16 %v592, %v591
    %v608 = vpack.c.b16 %v594, %v593
    %v609 = vpack.c.b16 %v596, %v595
    %v610 = vpack.c.b16 %v598, %v597
    %v611 = vpack.c.b16 %v600, %v599
    %v612 = vpack.c.b16 %v602, %v601
    %v613 = vpack.c.b16 %v604, %v603
    %v614 = vpack.c.b16 %v606, %v605
    %623 = vmatprep.subr.bf16.mxu0 0
    %624 = vmatpush1.bf16.msra.mxu0 %v567
    %625 = vmatprep.subr.bf16.mxu0 0
    %626 = vmatpush1.bf16.msra.mxu0 %v568
    %627 = vmatprep.subr.bf16.mxu0 0
    %628 = vmatpush1.bf16.msra.mxu0 %v569
    %629 = vmatprep.subr.bf16.mxu0 0
    %630 = vmatpush1.bf16.msra.mxu0 %v570
    %631 = vmatprep.subr.bf16.mxu0 0
    %632 = vmatpush1.bf16.msra.mxu0 %v571
    %633 = vmatprep.subr.bf16.mxu0 0
    %634 = vmatpush1.bf16.msra.mxu0 %v572
    %635 = vmatprep.subr.bf16.mxu0 0
    %636 = vmatpush1.bf16.msra.mxu0 %v573
    %637 = vmatprep.subr.bf16.mxu0 0
    %638 = vmatpush1.bf16.msra.mxu0 %v574
    %639 = vmatprep.subr.bf16.mxu0 0
    %640 = vmatpush1.bf16.msra.mxu0 0
    %641 = vmatprep.subr.bf16.mxu0 0
    %642 = vmatpush1.bf16.msra.mxu0 0
    %643 = vmatprep.subr.bf16.mxu0 0
    %644 = vmatpush1.bf16.msra.mxu0 0
    %645 = vmatprep.subr.bf16.mxu0 0
    %646 = vmatpush1.bf16.msra.mxu0 0
    %647 = vmatprep.subr.bf16.mxu0 0
    %648 = vmatpush1.bf16.msra.mxu0 0
    %649 = vmatprep.subr.bf16.mxu0 0
    %650 = vmatpush1.bf16.msra.mxu0 0
    %651 = vmatprep.subr.bf16.mxu0 0
    %652 = vmatpush1.bf16.msra.mxu0 0
    %653 = vmatprep.subr.bf16.mxu0 0
    %654 = vmatpush1.bf16.msra.mxu0 0
    %655 = vmatprep.mubr.bf16.mxu0 0
    %656 = vmatmul.mubr.bf16.gmra.mrb[0].mxu0 %v607
    %v657 = vpop.f32.mrb[0].mxu0
    %v658 = vadd.f32 0.0, %v657
    %v659 = vpop.f32.mrb[0].mxu0
    %v660 = vpop.f32.mrb[0].mxu0
    %v661 = vadd.f32 0.0, %v660
    %v662 = vpop.f32.mrb[0].mxu0
    %663 = vmatprep.mubr.bf16.mxu0 0
    %664 = vmatmul.mubr.bf16.gmra.mrb[0].mxu0 %v608
    %v665 = vpop.f32.mrb[0].mxu0
    %v666 = vadd.f32 0.0, %v665
    %v667 = vpop.f32.mrb[0].mxu0
    %v668 = vpop.f32.mrb[0].mxu0
    %v669 = vadd.f32 0.0, %v668
    %v670 = vpop.f32.mrb[0].mxu0
    %671 = vmatprep.mubr.bf16.mxu0 0
    %672 = vmatmul.mubr.bf16.gmra.mrb[0].mxu0 %v609
    %v673 = vpop.f32.mrb[0].mxu0
    %v674 = vadd.f32 0.0, %v673
    %v675 = vpop.f32.mrb[0].mxu0
    %v676 = vpop.f32.mrb[0].mxu0
    %v677 = vadd.f32 0.0, %v676
    %v678 = vpop.f32.mrb[0].mxu0
    %679 = vmatprep.mubr.bf16.mxu0 0
    %680 = vmatmul.mubr.bf16.gmra.mrb[0].mxu0 %v610
    %v681 = vpop.f32.mrb[0].mxu0
    %v682 = vadd.f32 0.0, %v681
    %v683 = vpop.f32.mrb[0].mxu0
    %v684 = vpop.f32.mrb[0].mxu0
    %v685 = vadd.f32 0.0, %v684
    %v686 = vpop.f32.mrb[0].mxu0
    %687 = vmatprep.mubr.bf16.mxu0 0
    %688 = vmatmul.mubr.bf16.gmra.mrb[0].mxu0 %v611
    %v689 = vpop.f32.mrb[0].mxu0
    %v690 = vadd.f32 0.0, %v689
    %v691 = vpop.f32.mrb[0].mxu0
    %v692 = vpop.f32.mrb[0].mxu0
    %v693 = vadd.f32 0.0, %v692
    %v694 = vpop.f32.mrb[0].mxu0
    %695 = vmatprep.mubr.bf16.mxu0 0
    %696 = vmatmul.mubr.bf16.gmra.mrb[0].mxu0 %v612
    %v697 = vpop.f32.mrb[0].mxu0
    %v698 = vadd.f32 0.0, %v697
    %v699 = vpop.f32.mrb[0].mxu0
    %v700 = vpop.f32.mrb[0].mxu0
    %v701 = vadd.f32 0.0, %v700
    %v702 = vpop.f32.mrb[0].mxu0
    %703 = vmatprep.mubr.bf16.mxu0 0
    %704 = vmatmul.mubr.bf16.gmra.mrb[0].mxu0 %v613
    %v705 = vpop.f32.mrb[0].mxu0
    %v706 = vadd.f32 0.0, %v705
    %v707 = vpop.f32.mrb[0].mxu0
    %v708 = vpop.f32.mrb[0].mxu0
    %v709 = vadd.f32 0.0, %v708
    %v710 = vpop.f32.mrb[0].mxu0
    %711 = vmatprep.mubr.bf16.mxu0 0
    %712 = vmatmul.mubr.bf16.gmra.mrb[0].mxu0 %v614
    %v713 = vpop.f32.mrb[0].mxu0
    %v714 = vadd.f32 0.0, %v713
    %v715 = vpop.f32.mrb[0].mxu0
    %v716 = vpop.f32.mrb[0].mxu0
    %v717 = vadd.f32 0.0, %v716
    %v718 = vpop.f32.mrb[0].mxu0
    %719 = vdwg.mxu0
    %s720 = scalar_lea.vmem [#allocation8], 128
    %v721 = vld [vmem:[%s720] sm:$0xff]
    %v722 = vld [vmem:[%s720 + $0x8] sm:$0xff]
    %v723 = vld [vmem:[%s720 + $0x10] sm:$0xff]
    %v724 = vld [vmem:[%s720 + $0x18] sm:$0xff]
    %v725 = vld [vmem:[%s720 + $0x20] sm:$0xff]
    %v726 = vld [vmem:[%s720 + $0x28] sm:$0xff]
    %v727 = vld [vmem:[%s720 + $0x30] sm:$0xff]
    %v728 = vld [vmem:[%s720 + $0x38] sm:$0xff]
    %v729 = vld [vmem:[%s720 + $0x40] sm:$0xff]
    %v730 = vld [vmem:[%s720 + $0x48] sm:$0xff]
    %v731 = vld [vmem:[%s720 + $0x50] sm:$0xff]
    %v732 = vld [vmem:[%s720 + $0x58] sm:$0xff]
    %v733 = vld [vmem:[%s720 + $0x60] sm:$0xff]
    %v734 = vld [vmem:[%s720 + $0x68] sm:$0xff]
    %v735 = vld [vmem:[%s720 + $0x70] sm:$0xff]
    %v736 = vld [vmem:[%s720 + $0x78] sm:$0xff]
    %s737 = scalar_lea.vmem %s3, 1
    %v738 = vld [vmem:[%s737] sm:$0x1]
    %v740 = vlaneseq
    %v741 = vshrl.u32 %v740, 7
    %v742 = vsub.s32 0, %v741
    %v743 = vrot.slane %v738, %v742
    %745 = vmatprep.subr.mxu0 0.0
    %746 = vmatpush1.msra.mxu0 %v721
    %747 = vmatprep.subr.mxu0 0.0
    %748 = vmatpush1.msra.mxu0 %v722
    %749 = vmatprep.subr.mxu0 0.0
    %750 = vmatpush1.msra.mxu0 %v723
    %751 = vmatprep.subr.mxu0 0.0
    %752 = vmatpush1.msra.mxu0 %v724
    %753 = vmatprep.subr.mxu0 0.0
    %754 = vmatpush1.msra.mxu0 %v725
    %755 = vmatprep.subr.mxu0 0.0
    %756 = vmatpush1.msra.mxu0 %v726
    %757 = vmatprep.subr.mxu0 0.0
    %758 = vmatpush1.msra.mxu0 %v727
    %759 = vmatprep.subr.mxu0 0.0
    %760 = vmatpush1.msra.mxu0 %v728
    %761 = vmatprep.subr.mxu0 0.0
    %762 = vmatpush1.msra.mxu0 %v729
    %763 = vmatprep.subr.mxu0 0.0
    %764 = vmatpush1.msra.mxu0 %v730
    %765 = vmatprep.subr.mxu0 0.0
    %766 = vmatpush1.msra.mxu0 %v731
    %767 = vmatprep.subr.mxu0 0.0
    %768 = vmatpush1.msra.mxu0 %v732
    %769 = vmatprep.subr.mxu0 0.0
    %770 = vmatpush1.msra.mxu0 %v733
    %771 = vmatprep.subr.mxu0 0.0
    %772 = vmatpush1.msra.mxu0 %v734
    %773 = vmatprep.subr.mxu0 0.0
    %774 = vmatpush1.msra.mxu0 %v735
    %775 = vmatprep.subr.mxu0 0.0
    %776 = vmatpush1.msra.mxu0 %v736
    %777 = vmatprep.subr.mxu0 0.0
    %778 = vmatpush1.msra.mxu0 0.0
    %779 = vmatprep.subr.mxu0 0.0
    %780 = vmatpush1.msra.mxu0 0.0
    %781 = vmatprep.subr.mxu0 0.0
    %782 = vmatpush1.msra.mxu0 0.0
    %783 = vmatprep.subr.mxu0 0.0
    %784 = vmatpush1.msra.mxu0 0.0
    %785 = vmatprep.subr.mxu0 0.0
    %786 = vmatpush1.msra.mxu0 0.0
    %787 = vmatprep.subr.mxu0 0.0
    %788 = vmatpush1.msra.mxu0 0.0
    %789 = vmatprep.subr.mxu0 0.0
    %790 = vmatpush1.msra.mxu0 0.0
    %791 = vmatprep.subr.mxu0 0.0
    %792 = vmatpush1.msra.mxu0 0.0
    %793 = vmatprep.subr.mxu0 0.0
    %794 = vmatpush1.msra.mxu0 0.0
    %795 = vmatprep.subr.mxu0 0.0
    %796 = vmatpush1.msra.mxu0 0.0
    %797 = vmatprep.subr.mxu0 0.0
    %798 = vmatpush1.msra.mxu0 0.0
    %799 = vmatprep.subr.mxu0 0.0
    %800 = vmatpush1.msra.mxu0 0.0
    %801 = vmatprep.subr.mxu0 0.0
    %802 = vmatpush1.msra.mxu0 0.0
    %803 = vmatprep.subr.mxu0 0.0
    %804 = vmatpush1.msra.mxu0 0.0
    %805 = vmatprep.subr.mxu0 0.0
    %806 = vmatpush1.msra.mxu0 0.0
    %807 = vmatprep.subr.mxu0 0.0
    %808 = vmatpush1.msra.mxu0 0.0
    %809 = vmatprep.mubr.f32.mxu0 0.0
    %810 = vmatmul.mubr.f32.gmra.mrb[0].mxu0 %v658
    %v811 = vpop.f32.mrb[0].mxu0
    %v812 = vadd.f32 %v743, %v811
    %v813 = vpop.f32.mrb[0].mxu0
    %814 = vmatprep.mubr.f32.mxu0 0.0
    %815 = vmatmul.mubr.f32.gmra.mrb[0].mxu0 %v661
    %v816 = vpop.f32.mrb[0].mxu0
    %v817 = vadd.f32 %v743, %v816
    %v818 = vpop.f32.mrb[0].mxu0
    %819 = vmatprep.mubr.f32.mxu0 0.0
    %820 = vmatmul.mubr.f32.gmra.mrb[0].mxu0 %v666
    %v821 = vpop.f32.mrb[0].mxu0
    %v822 = vadd.f32 %v743, %v821
    %v823 = vpop.f32.mrb[0].mxu0
    %824 = vmatprep.mubr.f32.mxu0 0.0
    %825 = vmatmul.mubr.f32.gmra.mrb[0].mxu0 %v669
    %v826 = vpop.f32.mrb[0].mxu0
    %v827 = vadd.f32 %v743, %v826
    %v828 = vpop.f32.mrb[0].mxu0
    %829 = vmatprep.mubr.f32.mxu0 0.0
    %830 = vmatmul.mubr.f32.gmra.mrb[0].mxu0 %v674
    %v831 = vpop.f32.mrb[0].mxu0
    %v832 = vadd.f32 %v743, %v831
    %v833 = vpop.f32.mrb[0].mxu0
    %834 = vmatprep.mubr.f32.mxu0 0.0
    %835 = vmatmul.mubr.f32.gmra.mrb[0].mxu0 %v677
    %v836 = vpop.f32.mrb[0].mxu0
    %v837 = vadd.f32 %v743, %v836
    %v838 = vpop.f32.mrb[0].mxu0
    %839 = vmatprep.mubr.f32.mxu0 0.0
    %840 = vmatmul.mubr.f32.gmra.mrb[0].mxu0 %v682
    %v841 = vpop.f32.mrb[0].mxu0
    %v842 = vadd.f32 %v743, %v841
    %v843 = vpop.f32.mrb[0].mxu0
    %844 = vmatprep.mubr.f32.mxu0 0.0
    %845 = vmatmul.mubr.f32.gmra.mrb[0].mxu0 %v685
    %v846 = vpop.f32.mrb[0].mxu0
    %v847 = vadd.f32 %v743, %v846
    %v848 = vpop.f32.mrb[0].mxu0
    %849 = vmatprep.mubr.f32.mxu0 0.0
    %850 = vmatmul.mubr.f32.gmra.mrb[0].mxu0 %v690
    %v851 = vpop.f32.mrb[0].mxu0
    %v852 = vadd.f32 %v743, %v851
    %v853 = vpop.f32.mrb[0].mxu0
    %854 = vmatprep.mubr.f32.mxu0 0.0
    %855 = vmatmul.mubr.f32.gmra.mrb[0].mxu0 %v693
    %v856 = vpop.f32.mrb[0].mxu0
    %v857 = vadd.f32 %v743, %v856
    %v858 = vpop.f32.mrb[0].mxu0
    %859 = vmatprep.mubr.f32.mxu0 0.0
    %860 = vmatmul.mubr.f32.gmra.mrb[0].mxu0 %v698
    %v861 = vpop.f32.mrb[0].mxu0
    %v862 = vadd.f32 %v743, %v861
    %v863 = vpop.f32.mrb[0].mxu0
    %864 = vmatprep.mubr.f32.mxu0 0.0
    %865 = vmatmul.mubr.f32.gmra.mrb[0].mxu0 %v701
    %v866 = vpop.f32.mrb[0].mxu0
    %v867 = vadd.f32 %v743, %v866
    %v868 = vpop.f32.mrb[0].mxu0
    %869 = vmatprep.mubr.f32.mxu0 0.0
    %870 = vmatmul.mubr.f32.gmra.mrb[0].mxu0 %v706
    %v871 = vpop.f32.mrb[0].mxu0
    %v872 = vadd.f32 %v743, %v871
    %v873 = vpop.f32.mrb[0].mxu0
    %874 = vmatprep.mubr.f32.mxu0 0.0
    %875 = vmatmul.mubr.f32.gmra.mrb[0].mxu0 %v709
    %v876 = vpop.f32.mrb[0].mxu0
    %v877 = vadd.f32 %v743, %v876
    %v878 = vpop.f32.mrb[0].mxu0
    %879 = vmatprep.mubr.f32.mxu0 0.0
    %880 = vmatmul.mubr.f32.gmra.mrb[0].mxu0 %v714
    %v881 = vpop.f32.mrb[0].mxu0
    %v882 = vadd.f32 %v743, %v881
    %v883 = vpop.f32.mrb[0].mxu0
    %884 = vmatprep.mubr.f32.mxu0 0.0
    %885 = vmatmul.mubr.f32.gmra.mrb[0].mxu0 %v717
    %v886 = vpop.f32.mrb[0].mxu0
    %v887 = vadd.f32 %v743, %v886
    %v888 = vpop.f32.mrb[0].mxu0
    %889 = vdwg.mxu0
    %v890 = vmax.f32 %v812, 0.0
    %v891 = vmax.f32 %v817, 0.0
    %v892 = vmax.f32 %v822, 0.0
    %v893 = vmax.f32 %v827, 0.0
    %v894 = vmax.f32 %v832, 0.0
    %v895 = vmax.f32 %v837, 0.0
    %v896 = vmax.f32 %v842, 0.0
    %v897 = vmax.f32 %v847, 0.0
    %v898 = vmax.f32 %v852, 0.0
    %v899 = vmax.f32 %v857, 0.0
    %v900 = vmax.f32 %v862, 0.0
    %v901 = vmax.f32 %v867, 0.0
    %v902 = vmax.f32 %v872, 0.0
    %v903 = vmax.f32 %v877, 0.0
    %v904 = vmax.f32 %v882, 0.0
    %v905 = vmax.f32 %v887, 0.0
    %906 = vst [vmem:[#allocation2] sm:$0xff] %v890
    %907 = vst [vmem:[#allocation2 + $0x8] sm:$0xff] %v891
    %908 = vst [vmem:[#allocation2 + $0x10] sm:$0xff] %v892
    %909 = vst [vmem:[#allocation2 + $0x18] sm:$0xff] %v893
    %910 = vst [vmem:[#allocation2 + $0x20] sm:$0xff] %v894
    %911 = vst [vmem:[#allocation2 + $0x28] sm:$0xff] %v895
    %912 = vst [vmem:[#allocation2 + $0x30] sm:$0xff] %v896
    %913 = vst [vmem:[#allocation2 + $0x38] sm:$0xff] %v897
    %914 = vst [vmem:[#allocation2 + $0x40] sm:$0xff] %v898
    %915 = vst [vmem:[#allocation2 + $0x48] sm:$0xff] %v899
    %916 = vst [vmem:[#allocation2 + $0x50] sm:$0xff] %v900
    %917 = vst [vmem:[#allocation2 + $0x58] sm:$0xff] %v901
    %918 = vst [vmem:[#allocation2 + $0x60] sm:$0xff] %v902
    %919 = vst [vmem:[#allocation2 + $0x68] sm:$0xff] %v903
    %920 = vst [vmem:[#allocation2 + $0x70] sm:$0xff] %v904
    %921 = vst [vmem:[#allocation2 + $0x78] sm:$0xff] %v905
    %v922 = vld [vmem:[#allocation3] sm:$0xf]
    %v923 = vld [vmem:[#allocation3 + $0x4] sm:$0xf]
    %v924 = vld [vmem:[#allocation3 + $0x8] sm:$0xf]
    %v925 = vld [vmem:[#allocation3 + $0xc] sm:$0xf]
    %v926 = vld [vmem:[#allocation3 + $0x10] sm:$0xf]
    %v927 = vld [vmem:[#allocation3 + $0x14] sm:$0xf]
    %v928 = vld [vmem:[#allocation3 + $0x18] sm:$0xf]
    %v929 = vld [vmem:[#allocation3 + $0x1c] sm:$0xf]
    %v930 = vld [vmem:[#allocation3 + $0x20] sm:$0xf]
    %v931 = vld [vmem:[#allocation3 + $0x24] sm:$0xf]
    %v932 = vld [vmem:[#allocation3 + $0x28] sm:$0xf]
    %v933 = vld [vmem:[#allocation3 + $0x2c] sm:$0xf]
    %v934 = vld [vmem:[#allocation3 + $0x30] sm:$0xf]
    %v935 = vld [vmem:[#allocation3 + $0x34] sm:$0xf]
    %v936 = vld [vmem:[#allocation3 + $0x38] sm:$0xf]
    %v937 = vld [vmem:[#allocation3 + $0x3c] sm:$0xf]
    %v938 = vld [vmem:[#allocation2] sm:$0xff]
    %v939 = vld [vmem:[#allocation2 + $0x8] sm:$0xff]
    %v940 = vld [vmem:[#allocation2 + $0x10] sm:$0xff]
    %v941 = vld [vmem:[#allocation2 + $0x18] sm:$0xff]
    %v942 = vld [vmem:[#allocation2 + $0x20] sm:$0xff]
    %v943 = vld [vmem:[#allocation2 + $0x28] sm:$0xff]
    %v944 = vld [vmem:[#allocation2 + $0x30] sm:$0xff]
    %v945 = vld [vmem:[#allocation2 + $0x38] sm:$0xff]
    %v946 = vld [vmem:[#allocation2 + $0x40] sm:$0xff]
    %v947 = vld [vmem:[#allocation2 + $0x48] sm:$0xff]
    %v948 = vld [vmem:[#allocation2 + $0x50] sm:$0xff]
    %v949 = vld [vmem:[#allocation2 + $0x58] sm:$0xff]
    %v950 = vld [vmem:[#allocation2 + $0x60] sm:$0xff]
    %v951 = vld [vmem:[#allocation2 + $0x68] sm:$0xff]
    %v952 = vld [vmem:[#allocation2 + $0x70] sm:$0xff]
    %v953 = vld [vmem:[#allocation2 + $0x78] sm:$0xff]
    %v954 = vpack.c.bf16 %v939, %v938
    %v955 = vpack.c.bf16 %v941, %v940
    %v956 = vpack.c.bf16 %v943, %v942
    %v957 = vpack.c.bf16 %v945, %v944
    %v958 = vpack.c.bf16 %v947, %v946
    %v959 = vpack.c.bf16 %v949, %v948
    %v960 = vpack.c.bf16 %v951, %v950
    %v961 = vpack.c.bf16 %v953, %v952
    %v978 = vunpack.c.l.b16 %v922
    %v979 = vunpack.c.l.b16 %v923
    %v980 = vunpack.c.l.b16 %v924
    %v981 = vunpack.c.l.b16 %v925
    %v982 = vunpack.c.l.b16 %v926
    %v983 = vunpack.c.l.b16 %v927
    %v984 = vunpack.c.l.b16 %v928
    %v985 = vunpack.c.l.b16 %v929
    %v986 = vunpack.c.l.b16 %v930
    %v987 = vunpack.c.l.b16 %v931
    %v988 = vunpack.c.l.b16 %v932
    %v989 = vunpack.c.l.b16 %v933
    %v990 = vunpack.c.l.b16 %v934
    %v991 = vunpack.c.l.b16 %v935
    %v992 = vunpack.c.l.b16 %v936
    %v993 = vunpack.c.l.b16 %v937
    %v994 = vpack.c.b16 %v979, %v978
    %v995 = vpack.c.b16 %v981, %v980
    %v996 = vpack.c.b16 %v983, %v982
    %v997 = vpack.c.b16 %v985, %v984
    %v998 = vpack.c.b16 %v987, %v986
    %v999 = vpack.c.b16 %v989, %v988
    %v1000 = vpack.c.b16 %v991, %v990
    %v1001 = vpack.c.b16 %v993, %v992
    %1010 = vmatprep.subr.bf16.mxu0 0
    %1011 = vmatpush1.bf16.msra.mxu0 %v954
    %1012 = vmatprep.subr.bf16.mxu0 0
    %1013 = vmatpush1.bf16.msra.mxu0 %v955
    %1014 = vmatprep.subr.bf16.mxu0 0
    %1015 = vmatpush1.bf16.msra.mxu0 %v956
    %1016 = vmatprep.subr.bf16.mxu0 0
    %1017 = vmatpush1.bf16.msra.mxu0 %v957
    %1018 = vmatprep.subr.bf16.mxu0 0
    %1019 = vmatpush1.bf16.msra.mxu0 %v958
    %1020 = vmatprep.subr.bf16.mxu0 0
    %1021 = vmatpush1.bf16.msra.mxu0 %v959
    %1022 = vmatprep.subr.bf16.mxu0 0
    %1023 = vmatpush1.bf16.msra.mxu0 %v960
    %1024 = vmatprep.subr.bf16.mxu0 0
    %1025 = vmatpush1.bf16.msra.mxu0 %v961
    %1026 = vmatprep.subr.bf16.mxu0 0
    %1027 = vmatpush1.bf16.msra.mxu0 0
    %1028 = vmatprep.subr.bf16.mxu0 0
    %1029 = vmatpush1.bf16.msra.mxu0 0
    %1030 = vmatprep.subr.bf16.mxu0 0
    %1031 = vmatpush1.bf16.msra.mxu0 0
    %1032 = vmatprep.subr.bf16.mxu0 0
    %1033 = vmatpush1.bf16.msra.mxu0 0
    %1034 = vmatprep.subr.bf16.mxu0 0
    %1035 = vmatpush1.bf16.msra.mxu0 0
    %1036 = vmatprep.subr.bf16.mxu0 0
    %1037 = vmatpush1.bf16.msra.mxu0 0
    %1038 = vmatprep.subr.bf16.mxu0 0
    %1039 = vmatpush1.bf16.msra.mxu0 0
    %1040 = vmatprep.subr.bf16.mxu0 0
    %1041 = vmatpush1.bf16.msra.mxu0 0
    %1042 = vmatprep.mubr.bf16.mxu0 0
    %1043 = vmatmul.mubr.bf16.gmra.mrb[0].mxu0 %v994
    %v1044 = vpop.f32.mrb[0].mxu0
    %v1045 = vadd.f32 0.0, %v1044
    %v1046 = vpop.f32.mrb[0].mxu0
    %v1047 = vpop.f32.mrb[0].mxu0
    %v1048 = vadd.f32 0.0, %v1047
    %v1049 = vpop.f32.mrb[0].mxu0
    %1050 = vmatprep.mubr.bf16.mxu0 0
    %1051 = vmatmul.mubr.bf16.gmra.mrb[0].mxu0 %v995
    %v1052 = vpop.f32.mrb[0].mxu0
    %v1053 = vadd.f32 0.0, %v1052
    %v1054 = vpop.f32.mrb[0].mxu0
    %v1055 = vpop.f32.mrb[0].mxu0
    %v1056 = vadd.f32 0.0, %v1055
    %v1057 = vpop.f32.mrb[0].mxu0
    %1058 = vmatprep.mubr.bf16.mxu0 0
    %1059 = vmatmul.mubr.bf16.gmra.mrb[0].mxu0 %v996
    %v1060 = vpop.f32.mrb[0].mxu0
    %v1061 = vadd.f32 0.0, %v1060
    %v1062 = vpop.f32.mrb[0].mxu0
    %v1063 = vpop.f32.mrb[0].mxu0
    %v1064 = vadd.f32 0.0, %v1063
    %v1065 = vpop.f32.mrb[0].mxu0
    %1066 = vmatprep.mubr.bf16.mxu0 0
    %1067 = vmatmul.mubr.bf16.gmra.mrb[0].mxu0 %v997
    %v1068 = vpop.f32.mrb[0].mxu0
    %v1069 = vadd.f32 0.0, %v1068
    %v1070 = vpop.f32.mrb[0].mxu0
    %v1071 = vpop.f32.mrb[0].mxu0
    %v1072 = vadd.f32 0.0, %v1071
    %v1073 = vpop.f32.mrb[0].mxu0
    %1074 = vmatprep.mubr.bf16.mxu0 0
    %1075 = vmatmul.mubr.bf16.gmra.mrb[0].mxu0 %v998
    %v1076 = vpop.f32.mrb[0].mxu0
    %v1077 = vadd.f32 0.0, %v1076
    %v1078 = vpop.f32.mrb[0].mxu0
    %v1079 = vpop.f32.mrb[0].mxu0
    %v1080 = vadd.f32 0.0, %v1079
    %v1081 = vpop.f32.mrb[0].mxu0
    %1082 = vmatprep.mubr.bf16.mxu0 0
    %1083 = vmatmul.mubr.bf16.gmra.mrb[0].mxu0 %v999
    %v1084 = vpop.f32.mrb[0].mxu0
    %v1085 = vadd.f32 0.0, %v1084
    %v1086 = vpop.f32.mrb[0].mxu0
    %v1087 = vpop.f32.mrb[0].mxu0
    %v1088 = vadd.f32 0.0, %v1087
    %v1089 = vpop.f32.mrb[0].mxu0
    %1090 = vmatprep.mubr.bf16.mxu0 0
    %1091 = vmatmul.mubr.bf16.gmra.mrb[0].mxu0 %v1000
    %v1092 = vpop.f32.mrb[0].mxu0
    %v1093 = vadd.f32 0.0, %v1092
    %v1094 = vpop.f32.mrb[0].mxu0
    %v1095 = vpop.f32.mrb[0].mxu0
    %v1096 = vadd.f32 0.0, %v1095
    %v1097 = vpop.f32.mrb[0].mxu0
    %1098 = vmatprep.mubr.bf16.mxu0 0
    %1099 = vmatmul.mubr.bf16.gmra.mrb[0].mxu0 %v1001
    %v1100 = vpop.f32.mrb[0].mxu0
    %v1101 = vadd.f32 0.0, %v1100
    %v1102 = vpop.f32.mrb[0].mxu0
    %v1103 = vpop.f32.mrb[0].mxu0
    %v1104 = vadd.f32 0.0, %v1103
    %v1105 = vpop.f32.mrb[0].mxu0
    %1106 = vdwg.mxu0
    %s1107 = scalar_lea.vmem [#allocation8], 256
    %v1108 = vld [vmem:[%s1107] sm:$0xff]
    %v1109 = vld [vmem:[%s1107 + $0x8] sm:$0xff]
    %v1110 = vld [vmem:[%s1107 + $0x10] sm:$0xff]
    %v1111 = vld [vmem:[%s1107 + $0x18] sm:$0xff]
    %v1112 = vld [vmem:[%s1107 + $0x20] sm:$0xff]
    %v1113 = vld [vmem:[%s1107 + $0x28] sm:$0xff]
    %v1114 = vld [vmem:[%s1107 + $0x30] sm:$0xff]
    %v1115 = vld [vmem:[%s1107 + $0x38] sm:$0xff]
    %v1116 = vld [vmem:[%s1107 + $0x40] sm:$0xff]
    %v1117 = vld [vmem:[%s1107 + $0x48] sm:$0xff]
    %v1118 = vld [vmem:[%s1107 + $0x50] sm:$0xff]
    %v1119 = vld [vmem:[%s1107 + $0x58] sm:$0xff]
    %v1120 = vld [vmem:[%s1107 + $0x60] sm:$0xff]
    %v1121 = vld [vmem:[%s1107 + $0x68] sm:$0xff]
    %v1122 = vld [vmem:[%s1107 + $0x70] sm:$0xff]
    %v1123 = vld [vmem:[%s1107 + $0x78] sm:$0xff]
    %s1124 = scalar_lea.vmem %s3, 2
    %v1125 = vld [vmem:[%s1124] sm:$0x1]
    %v1127 = vlaneseq
    %v1128 = vshrl.u32 %v1127, 7
    %v1129 = vsub.s32 0, %v1128
    %v1130 = vrot.slane %v1125, %v1129
    %1132 = vmatprep.subr.mxu0 0.0
    %1133 = vmatpush1.msra.mxu0 %v1108
    %1134 = vmatprep.subr.mxu0 0.0
    %1135 = vmatpush1.msra.mxu0 %v1109
    %1136 = vmatprep.subr.mxu0 0.0
    %1137 = vmatpush1.msra.mxu0 %v1110
    %1138 = vmatprep.subr.mxu0 0.0
    %1139 = vmatpush1.msra.mxu0 %v1111
    %1140 = vmatprep.subr.mxu0 0.0
    %1141 = vmatpush1.msra.mxu0 %v1112
    %1142 = vmatprep.subr.mxu0 0.0
    %1143 = vmatpush1.msra.mxu0 %v1113
    %1144 = vmatprep.subr.mxu0 0.0
    %1145 = vmatpush1.msra.mxu0 %v1114
    %1146 = vmatprep.subr.mxu0 0.0
    %1147 = vmatpush1.msra.mxu0 %v1115
    %1148 = vmatprep.subr.mxu0 0.0
    %1149 = vmatpush1.msra.mxu0 %v1116
    %1150 = vmatprep.subr.mxu0 0.0
    %1151 = vmatpush1.msra.mxu0 %v1117
    %1152 = vmatprep.subr.mxu0 0.0
    %1153 = vmatpush1.msra.mxu0 %v1118
    %1154 = vmatprep.subr.mxu0 0.0
    %1155 = vmatpush1.msra.mxu0 %v1119
    %1156 = vmatprep.subr.mxu0 0.0
    %1157 = vmatpush1.msra.mxu0 %v1120
    %1158 = vmatprep.subr.mxu0 0.0
    %1159 = vmatpush1.msra.mxu0 %v1121
    %1160 = vmatprep.subr.mxu0 0.0
    %1161 = vmatpush1.msra.mxu0 %v1122
    %1162 = vmatprep.subr.mxu0 0.0
    %1163 = vmatpush1.msra.mxu0 %v1123
    %1164 = vmatprep.subr.mxu0 0.0
    %1165 = vmatpush1.msra.mxu0 0.0
    %1166 = vmatprep.subr.mxu0 0.0
    %1167 = vmatpush1.msra.mxu0 0.0
    %1168 = vmatprep.subr.mxu0 0.0
    %1169 = vmatpush1.msra.mxu0 0.0
    %1170 = vmatprep.subr.mxu0 0.0
    %1171 = vmatpush1.msra.mxu0 0.0
    %1172 = vmatprep.subr.mxu0 0.0
    %1173 = vmatpush1.msra.mxu0 0.0
    %1174 = vmatprep.subr.mxu0 0.0
    %1175 = vmatpush1.msra.mxu0 0.0
    %1176 = vmatprep.subr.mxu0 0.0
    %1177 = vmatpush1.msra.mxu0 0.0
    %1178 = vmatprep.subr.mxu0 0.0
    %1179 = vmatpush1.msra.mxu0 0.0
    %1180 = vmatprep.subr.mxu0 0.0
    %1181 = vmatpush1.msra.mxu0 0.0
    %1182 = vmatprep.subr.mxu0 0.0
    %1183 = vmatpush1.msra.mxu0 0.0
    %1184 = vmatprep.subr.mxu0 0.0
    %1185 = vmatpush1.msra.mxu0 0.0
    %1186 = vmatprep.subr.mxu0 0.0
    %1187 = vmatpush1.msra.mxu0 0.0
    %1188 = vmatprep.subr.mxu0 0.0
    %1189 = vmatpush1.msra.mxu0 0.0
    %1190 = vmatprep.subr.mxu0 0.0
    %1191 = vmatpush1.msra.mxu0 0.0
    %1192 = vmatprep.subr.mxu0 0.0
    %1193 = vmatpush1.msra.mxu0 0.0
    %1194 = vmatprep.subr.mxu0 0.0
    %1195 = vmatpush1.msra.mxu0 0.0
    %1196 = vmatprep.mubr.f32.mxu0 0.0
    %1197 = vmatmul.mubr.f32.gmra.mrb[0].mxu0 %v1045
    %v1198 = vpop.f32.mrb[0].mxu0
    %v1199 = vadd.f32 %v1130, %v1198
    %v1200 = vpop.f32.mrb[0].mxu0
    %1201 = vmatprep.mubr.f32.mxu0 0.0
    %1202 = vmatmul.mubr.f32.gmra.mrb[0].mxu0 %v1048
    %v1203 = vpop.f32.mrb[0].mxu0
    %v1204 = vadd.f32 %v1130, %v1203
    %v1205 = vpop.f32.mrb[0].mxu0
    %1206 = vmatprep.mubr.f32.mxu0 0.0
    %1207 = vmatmul.mubr.f32.gmra.mrb[0].mxu0 %v1053
    %v1208 = vpop.f32.mrb[0].mxu0
    %v1209 = vadd.f32 %v1130, %v1208
    %v1210 = vpop.f32.mrb[0].mxu0
    %1211 = vmatprep.mubr.f32.mxu0 0.0
    %1212 = vmatmul.mubr.f32.gmra.mrb[0].mxu0 %v1056
    %v1213 = vpop.f32.mrb[0].mxu0
    %v1214 = vadd.f32 %v1130, %v1213
    %v1215 = vpop.f32.mrb[0].mxu0
    %1216 = vmatprep.mubr.f32.mxu0 0.0
    %1217 = vmatmul.mubr.f32.gmra.mrb[0].mxu0 %v1061
    %v1218 = vpop.f32.mrb[0].mxu0
    %v1219 = vadd.f32 %v1130, %v1218
    %v1220 = vpop.f32.mrb[0].mxu0
    %1221 = vmatprep.mubr.f32.mxu0 0.0
    %1222 = vmatmul.mubr.f32.gmra.mrb[0].mxu0 %v1064
    %v1223 = vpop.f32.mrb[0].mxu0
    %v1224 = vadd.f32 %v1130, %v1223
    %v1225 = vpop.f32.mrb[0].mxu0
    %1226 = vmatprep.mubr.f32.mxu0 0.0
    %1227 = vmatmul.mubr.f32.gmra.mrb[0].mxu0 %v1069
    %v1228 = vpop.f32.mrb[0].mxu0
    %v1229 = vadd.f32 %v1130, %v1228
    %v1230 = vpop.f32.mrb[0].mxu0
    %1231 = vmatprep.mubr.f32.mxu0 0.0
    %1232 = vmatmul.mubr.f32.gmra.mrb[0].mxu0 %v1072
    %v1233 = vpop.f32.mrb[0].mxu0
    %v1234 = vadd.f32 %v1130, %v1233
    %v1235 = vpop.f32.mrb[0].mxu0
    %1236 = vmatprep.mubr.f32.mxu0 0.0
    %1237 = vmatmul.mubr.f32.gmra.mrb[0].mxu0 %v1077
    %v1238 = vpop.f32.mrb[0].mxu0
    %v1239 = vadd.f32 %v1130, %v1238
    %v1240 = vpop.f32.mrb[0].mxu0
    %1241 = vmatprep.mubr.f32.mxu0 0.0
    %1242 = vmatmul.mubr.f32.gmra.mrb[0].mxu0 %v1080
    %v1243 = vpop.f32.mrb[0].mxu0
    %v1244 = vadd.f32 %v1130, %v1243
    %v1245 = vpop.f32.mrb[0].mxu0
    %1246 = vmatprep.mubr.f32.mxu0 0.0
    %1247 = vmatmul.mubr.f32.gmra.mrb[0].mxu0 %v1085
    %v1248 = vpop.f32.mrb[0].mxu0
    %v1249 = vadd.f32 %v1130, %v1248
    %v1250 = vpop.f32.mrb[0].mxu0
    %1251 = vmatprep.mubr.f32.mxu0 0.0
    %1252 = vmatmul.mubr.f32.gmra.mrb[0].mxu0 %v1088
    %v1253 = vpop.f32.mrb[0].mxu0
    %v1254 = vadd.f32 %v1130, %v1253
    %v1255 = vpop.f32.mrb[0].mxu0
    %1256 = vmatprep.mubr.f32.mxu0 0.0
    %1257 = vmatmul.mubr.f32.gmra.mrb[0].mxu0 %v1093
    %v1258 = vpop.f32.mrb[0].mxu0
    %v1259 = vadd.f32 %v1130, %v1258
    %v1260 = vpop.f32.mrb[0].mxu0
    %1261 = vmatprep.mubr.f32.mxu0 0.0
    %1262 = vmatmul.mubr.f32.gmra.mrb[0].mxu0 %v1096
    %v1263 = vpop.f32.mrb[0].mxu0
    %v1264 = vadd.f32 %v1130, %v1263
    %v1265 = vpop.f32.mrb[0].mxu0
    %1266 = vmatprep.mubr.f32.mxu0 0.0
    %1267 = vmatmul.mubr.f32.gmra.mrb[0].mxu0 %v1101
    %v1268 = vpop.f32.mrb[0].mxu0
    %v1269 = vadd.f32 %v1130, %v1268
    %v1270 = vpop.f32.mrb[0].mxu0
    %1271 = vmatprep.mubr.f32.mxu0 0.0
    %1272 = vmatmul.mubr.f32.gmra.mrb[0].mxu0 %v1104
    %v1273 = vpop.f32.mrb[0].mxu0
    %v1274 = vadd.f32 %v1130, %v1273
    %v1275 = vpop.f32.mrb[0].mxu0
    %1276 = vdwg.mxu0
    %v1277 = vmax.f32 %v1199, 0.0
    %v1278 = vmax.f32 %v1204, 0.0
    %v1279 = vmax.f32 %v1209, 0.0
    %v1280 = vmax.f32 %v1214, 0.0
    %v1281 = vmax.f32 %v1219, 0.0
    %v1282 = vmax.f32 %v1224, 0.0
    %v1283 = vmax.f32 %v1229, 0.0
    %v1284 = vmax.f32 %v1234, 0.0
    %v1285 = vmax.f32 %v1239, 0.0
    %v1286 = vmax.f32 %v1244, 0.0
    %v1287 = vmax.f32 %v1249, 0.0
    %v1288 = vmax.f32 %v1254, 0.0
    %v1289 = vmax.f32 %v1259, 0.0
    %v1290 = vmax.f32 %v1264, 0.0
    %v1291 = vmax.f32 %v1269, 0.0
    %v1292 = vmax.f32 %v1274, 0.0
    %1293 = vst [vmem:[#allocation2] sm:$0xff] %v1277
    %1294 = vst [vmem:[#allocation2 + $0x8] sm:$0xff] %v1278
    %1295 = vst [vmem:[#allocation2 + $0x10] sm:$0xff] %v1279
    %1296 = vst [vmem:[#allocation2 + $0x18] sm:$0xff] %v1280
    %1297 = vst [vmem:[#allocation2 + $0x20] sm:$0xff] %v1281
    %1298 = vst [vmem:[#allocation2 + $0x28] sm:$0xff] %v1282
    %1299 = vst [vmem:[#allocation2 + $0x30] sm:$0xff] %v1283
    %1300 = vst [vmem:[#allocation2 + $0x38] sm:$0xff] %v1284
    %1301 = vst [vmem:[#allocation2 + $0x40] sm:$0xff] %v1285
    %1302 = vst [vmem:[#allocation2 + $0x48] sm:$0xff] %v1286
    %1303 = vst [vmem:[#allocation2 + $0x50] sm:$0xff] %v1287
    %1304 = vst [vmem:[#allocation2 + $0x58] sm:$0xff] %v1288
    %1305 = vst [vmem:[#allocation2 + $0x60] sm:$0xff] %v1289
    %1306 = vst [vmem:[#allocation2 + $0x68] sm:$0xff] %v1290
    %1307 = vst [vmem:[#allocation2 + $0x70] sm:$0xff] %v1291
    %1308 = vst [vmem:[#allocation2 + $0x78] sm:$0xff] %v1292
    %v1309 = vld [vmem:[#allocation3] sm:$0xf]
    %v1310 = vld [vmem:[#allocation3 + $0x4] sm:$0xf]
    %v1311 = vld [vmem:[#allocation3 + $0x8] sm:$0xf]
    %v1312 = vld [vmem:[#allocation3 + $0xc] sm:$0xf]
    %v1313 = vld [vmem:[#allocation3 + $0x10] sm:$0xf]
    %v1314 = vld [vmem:[#allocation3 + $0x14] sm:$0xf]
    %v1315 = vld [vmem:[#allocation3 + $0x18] sm:$0xf]
    %v1316 = vld [vmem:[#allocation3 + $0x1c] sm:$0xf]
    %v1317 = vld [vmem:[#allocation3 + $0x20] sm:$0xf]
    %v1318 = vld [vmem:[#allocation3 + $0x24] sm:$0xf]
    %v1319 = vld [vmem:[#allocation3 + $0x28] sm:$0xf]
    %v1320 = vld [vmem:[#allocation3 + $0x2c] sm:$0xf]
    %v1321 = vld [vmem:[#allocation3 + $0x30] sm:$0xf]
    %v1322 = vld [vmem:[#allocation3 + $0x34] sm:$0xf]
    %v1323 = vld [vmem:[#allocation3 + $0x38] sm:$0xf]
    %v1324 = vld [vmem:[#allocation3 + $0x3c] sm:$0xf]
    %v1325 = vld [vmem:[#allocation2] sm:$0xff]
    %v1326 = vld [vmem:[#allocation2 + $0x8] sm:$0xff]
    %v1327 = vld [vmem:[#allocation2 + $0x10] sm:$0xff]
    %v1328 = vld [vmem:[#allocation2 + $0x18] sm:$0xff]
    %v1329 = vld [vmem:[#allocation2 + $0x20] sm:$0xff]
    %v1330 = vld [vmem:[#allocation2 + $0x28] sm:$0xff]
    %v1331 = vld [vmem:[#allocation2 + $0x30] sm:$0xff]
    %v1332 = vld [vmem:[#allocation2 + $0x38] sm:$0xff]
    %v1333 = vld [vmem:[#allocation2 + $0x40] sm:$0xff]
    %v1334 = vld [vmem:[#allocation2 + $0x48] sm:$0xff]
    %v1335 = vld [vmem:[#allocation2 + $0x50] sm:$0xff]
    %v1336 = vld [vmem:[#allocation2 + $0x58] sm:$0xff]
    %v1337 = vld [vmem:[#allocation2 + $0x60] sm:$0xff]
    %v1338 = vld [vmem:[#allocation2 + $0x68] sm:$0xff]
    %v1339 = vld [vmem:[#allocation2 + $0x70] sm:$0xff]
    %v1340 = vld [vmem:[#allocation2 + $0x78] sm:$0xff]
    %v1341 = vpack.c.bf16 %v1326, %v1325
    %v1342 = vpack.c.bf16 %v1328, %v1327
    %v1343 = vpack.c.bf16 %v1330, %v1329
    %v1344 = vpack.c.bf16 %v1332, %v1331
    %v1345 = vpack.c.bf16 %v1334, %v1333
    %v1346 = vpack.c.bf16 %v1336, %v1335
    %v1347 = vpack.c.bf16 %v1338, %v1337
    %v1348 = vpack.c.bf16 %v1340, %v1339
    %v1365 = vunpack.c.l.b16 %v1309
    %v1366 = vunpack.c.l.b16 %v1310
    %v1367 = vunpack.c.l.b16 %v1311
    %v1368 = vunpack.c.l.b16 %v1312
    %v1369 = vunpack.c.l.b16 %v1313
    %v1370 = vunpack.c.l.b16 %v1314
    %v1371 = vunpack.c.l.b16 %v1315
    %v1372 = vunpack.c.l.b16 %v1316
    %v1373 = vunpack.c.l.b16 %v1317
    %v1374 = vunpack.c.l.b16 %v1318
    %v1375 = vunpack.c.l.b16 %v1319
    %v1376 = vunpack.c.l.b16 %v1320
    %v1377 = vunpack.c.l.b16 %v1321
    %v1378 = vunpack.c.l.b16 %v1322
    %v1379 = vunpack.c.l.b16 %v1323
    %v1380 = vunpack.c.l.b16 %v1324
    %v1381 = vpack.c.b16 %v1366, %v1365
    %v1382 = vpack.c.b16 %v1368, %v1367
    %v1383 = vpack.c.b16 %v1370, %v1369
    %v1384 = vpack.c.b16 %v1372, %v1371
    %v1385 = vpack.c.b16 %v1374, %v1373
    %v1386 = vpack.c.b16 %v1376, %v1375
    %v1387 = vpack.c.b16 %v1378, %v1377
    %v1388 = vpack.c.b16 %v1380, %v1379
    %1397 = vmatprep.subr.bf16.mxu0 0
    %1398 = vmatpush1.bf16.msra.mxu0 %v1341
    %1399 = vmatprep.subr.bf16.mxu0 0
    %1400 = vmatpush1.bf16.msra.mxu0 %v1342
    %1401 = vmatprep.subr.bf16.mxu0 0
    %1402 = vmatpush1.bf16.msra.mxu0 %v1343
    %1403 = vmatprep.subr.bf16.mxu0 0
    %1404 = vmatpush1.bf16.msra.mxu0 %v1344
    %1405 = vmatprep.subr.bf16.mxu0 0
    %1406 = vmatpush1.bf16.msra.mxu0 %v1345
    %1407 = vmatprep.subr.bf16.mxu0 0
    %1408 = vmatpush1.bf16.msra.mxu0 %v1346
    %1409 = vmatprep.subr.bf16.mxu0 0
    %1410 = vmatpush1.bf16.msra.mxu0 %v1347
    %1411 = vmatprep.subr.bf16.mxu0 0
    %1412 = vmatpush1.bf16.msra.mxu0 %v1348
    %1413 = vmatprep.subr.bf16.mxu0 0
    %1414 = vmatpush1.bf16.msra.mxu0 0
    %1415 = vmatprep.subr.bf16.mxu0 0
    %1416 = vmatpush1.bf16.msra.mxu0 0
    %1417 = vmatprep.subr.bf16.mxu0 0
    %1418 = vmatpush1.bf16.msra.mxu0 0
    %1419 = vmatprep.subr.bf16.mxu0 0
    %1420 = vmatpush1.bf16.msra.mxu0 0
    %1421 = vmatprep.subr.bf16.mxu0 0
    %1422 = vmatpush1.bf16.msra.mxu0 0
    %1423 = vmatprep.subr.bf16.mxu0 0
    %1424 = vmatpush1.bf16.msra.mxu0 0
    %1425 = vmatprep.subr.bf16.mxu0 0
    %1426 = vmatpush1.bf16.msra.mxu0 0
    %1427 = vmatprep.subr.bf16.mxu0 0
    %1428 = vmatpush1.bf16.msra.mxu0 0
    %1429 = vmatprep.mubr.bf16.mxu0 0
    %1430 = vmatmul.mubr.bf16.gmra.mrb[0].mxu0 %v1381
    %v1431 = vpop.f32.mrb[0].mxu0
    %v1432 = vadd.f32 0.0, %v1431
    %v1433 = vpop.f32.mrb[0].mxu0
    %v1434 = vpop.f32.mrb[0].mxu0
    %v1435 = vadd.f32 0.0, %v1434
    %v1436 = vpop.f32.mrb[0].mxu0
    %1437 = vmatprep.mubr.bf16.mxu0 0
    %1438 = vmatmul.mubr.bf16.gmra.mrb[0].mxu0 %v1382
    %v1439 = vpop.f32.mrb[0].mxu0
    %v1440 = vadd.f32 0.0, %v1439
    %v1441 = vpop.f32.mrb[0].mxu0
    %v1442 = vpop.f32.mrb[0].mxu0
    %v1443 = vadd.f32 0.0, %v1442
    %v1444 = vpop.f32.mrb[0].mxu0
    %1445 = vmatprep.mubr.bf16.mxu0 0
    %1446 = vmatmul.mubr.bf16.gmra.mrb[0].mxu0 %v1383
    %v1447 = vpop.f32.mrb[0].mxu0
    %v1448 = vadd.f32 0.0, %v1447
    %v1449 = vpop.f32.mrb[0].mxu0
    %v1450 = vpop.f32.mrb[0].mxu0
    %v1451 = vadd.f32 0.0, %v1450
    %v1452 = vpop.f32.mrb[0].mxu0
    %1453 = vmatprep.mubr.bf16.mxu0 0
    %1454 = vmatmul.mubr.bf16.gmra.mrb[0].mxu0 %v1384
    %v1455 = vpop.f32.mrb[0].mxu0
    %v1456 = vadd.f32 0.0, %v1455
    %v1457 = vpop.f32.mrb[0].mxu0
    %v1458 = vpop.f32.mrb[0].mxu0
    %v1459 = vadd.f32 0.0, %v1458
    %v1460 = vpop.f32.mrb[0].mxu0
    %1461 = vmatprep.mubr.bf16.mxu0 0
    %1462 = vmatmul.mubr.bf16.gmra.mrb[0].mxu0 %v1385
    %v1463 = vpop.f32.mrb[0].mxu0
    %v1464 = vadd.f32 0.0, %v1463
    %v1465 = vpop.f32.mrb[0].mxu0
    %v1466 = vpop.f32.mrb[0].mxu0
    %v1467 = vadd.f32 0.0, %v1466
    %v1468 = vpop.f32.mrb[0].mxu0
    %1469 = vmatprep.mubr.bf16.mxu0 0
    %1470 = vmatmul.mubr.bf16.gmra.mrb[0].mxu0 %v1386
    %v1471 = vpop.f32.mrb[0].mxu0
    %v1472 = vadd.f32 0.0, %v1471
    %v1473 = vpop.f32.mrb[0].mxu0
    %v1474 = vpop.f32.mrb[0].mxu0
    %v1475 = vadd.f32 0.0, %v1474
    %v1476 = vpop.f32.mrb[0].mxu0
    %1477 = vmatprep.mubr.bf16.mxu0 0
    %1478 = vmatmul.mubr.bf16.gmra.mrb[0].mxu0 %v1387
    %v1479 = vpop.f32.mrb[0].mxu0
    %v1480 = vadd.f32 0.0, %v1479
    %v1481 = vpop.f32.mrb[0].mxu0
    %v1482 = vpop.f32.mrb[0].mxu0
    %v1483 = vadd.f32 0.0, %v1482
    %v1484 = vpop.f32.mrb[0].mxu0
    %1485 = vmatprep.mubr.bf16.mxu0 0
    %1486 = vmatmul.mubr.bf16.gmra.mrb[0].mxu0 %v1388
    %v1487 = vpop.f32.mrb[0].mxu0
    %v1488 = vadd.f32 0.0, %v1487
    %v1489 = vpop.f32.mrb[0].mxu0
    %v1490 = vpop.f32.mrb[0].mxu0
    %v1491 = vadd.f32 0.0, %v1490
    %v1492 = vpop.f32.mrb[0].mxu0
    %1493 = vdwg.mxu0
    %s1494 = scalar_lea.vmem [#allocation8], 384
    %v1495 = vld [vmem:[%s1494] sm:$0xff]
    %v1496 = vld [vmem:[%s1494 + $0x8] sm:$0xff]
    %v1497 = vld [vmem:[%s1494 + $0x10] sm:$0xff]
    %v1498 = vld [vmem:[%s1494 + $0x18] sm:$0xff]
    %v1499 = vld [vmem:[%s1494 + $0x20] sm:$0xff]
    %v1500 = vld [vmem:[%s1494 + $0x28] sm:$0xff]
    %v1501 = vld [vmem:[%s1494 + $0x30] sm:$0xff]
    %v1502 = vld [vmem:[%s1494 + $0x38] sm:$0xff]
    %v1503 = vld [vmem:[%s1494 + $0x40] sm:$0xff]
    %v1504 = vld [vmem:[%s1494 + $0x48] sm:$0xff]
    %v1505 = vld [vmem:[%s1494 + $0x50] sm:$0xff]
    %v1506 = vld [vmem:[%s1494 + $0x58] sm:$0xff]
    %v1507 = vld [vmem:[%s1494 + $0x60] sm:$0xff]
    %v1508 = vld [vmem:[%s1494 + $0x68] sm:$0xff]
    %v1509 = vld [vmem:[%s1494 + $0x70] sm:$0xff]
    %v1510 = vld [vmem:[%s1494 + $0x78] sm:$0xff]
    %s1511 = scalar_lea.vmem %s3, 3
    %v1512 = vld [vmem:[%s1511] sm:$0x1]
    %v1514 = vlaneseq
    %v1515 = vshrl.u32 %v1514, 7
    %v1516 = vsub.s32 0, %v1515
    %v1517 = vrot.slane %v1512, %v1516
    %1519 = vmatprep.subr.mxu0 0.0
    %1520 = vmatpush1.msra.mxu0 %v1495
    %1521 = vmatprep.subr.mxu0 0.0
    %1522 = vmatpush1.msra.mxu0 %v1496
    %1523 = vmatprep.subr.mxu0 0.0
    %1524 = vmatpush1.msra.mxu0 %v1497
    %1525 = vmatprep.subr.mxu0 0.0
    %1526 = vmatpush1.msra.mxu0 %v1498
    %1527 = vmatprep.subr.mxu0 0.0
    %1528 = vmatpush1.msra.mxu0 %v1499
    %1529 = vmatprep.subr.mxu0 0.0
    %1530 = vmatpush1.msra.mxu0 %v1500
    %1531 = vmatprep.subr.mxu0 0.0
    %1532 = vmatpush1.msra.mxu0 %v1501
    %1533 = vmatprep.subr.mxu0 0.0
    %1534 = vmatpush1.msra.mxu0 %v1502
    %1535 = vmatprep.subr.mxu0 0.0
    %1536 = vmatpush1.msra.mxu0 %v1503
    %1537 = vmatprep.subr.mxu0 0.0
    %1538 = vmatpush1.msra.mxu0 %v1504
    %1539 = vmatprep.subr.mxu0 0.0
    %1540 = vmatpush1.msra.mxu0 %v1505
    %1541 = vmatprep.subr.mxu0 0.0
    %1542 = vmatpush1.msra.mxu0 %v1506
    %1543 = vmatprep.subr.mxu0 0.0
    %1544 = vmatpush1.msra.mxu0 %v1507
    %1545 = vmatprep.subr.mxu0 0.0
    %1546 = vmatpush1.msra.mxu0 %v1508
    %1547 = vmatprep.subr.mxu0 0.0
    %1548 = vmatpush1.msra.mxu0 %v1509
    %1549 = vmatprep.subr.mxu0 0.0
    %1550 = vmatpush1.msra.mxu0 %v1510
    %1551 = vmatprep.subr.mxu0 0.0
    %1552 = vmatpush1.msra.mxu0 0.0
    %1553 = vmatprep.subr.mxu0 0.0
    %1554 = vmatpush1.msra.mxu0 0.0
    %1555 = vmatprep.subr.mxu0 0.0
    %1556 = vmatpush1.msra.mxu0 0.0
    %1557 = vmatprep.subr.mxu0 0.0
    %1558 = vmatpush1.msra.mxu0 0.0
    %1559 = vmatprep.subr.mxu0 0.0
    %1560 = vmatpush1.msra.mxu0 0.0
    %1561 = vmatprep.subr.mxu0 0.0
    %1562 = vmatpush1.msra.mxu0 0.0
    %1563 = vmatprep.subr.mxu0 0.0
    %1564 = vmatpush1.msra.mxu0 0.0
    %1565 = vmatprep.subr.mxu0 0.0
    %1566 = vmatpush1.msra.mxu0 0.0
    %1567 = vmatprep.subr.mxu0 0.0
    %1568 = vmatpush1.msra.mxu0 0.0
    %1569 = vmatprep.subr.mxu0 0.0
    %1570 = vmatpush1.msra.mxu0 0.0
    %1571 = vmatprep.subr.mxu0 0.0
    %1572 = vmatpush1.msra.mxu0 0.0
    %1573 = vmatprep.subr.mxu0 0.0
    %1574 = vmatpush1.msra.mxu0 0.0
    %1575 = vmatprep.subr.mxu0 0.0
    %1576 = vmatpush1.msra.mxu0 0.0
    %1577 = vmatprep.subr.mxu0 0.0
    %1578 = vmatpush1.msra.mxu0 0.0
    %1579 = vmatprep.subr.mxu0 0.0
    %1580 = vmatpush1.msra.mxu0 0.0
    %1581 = vmatprep.subr.mxu0 0.0
    %1582 = vmatpush1.msra.mxu0 0.0
    %1583 = vmatprep.mubr.f32.mxu0 0.0
    %1584 = vmatmul.mubr.f32.gmra.mrb[0].mxu0 %v1432
    %v1585 = vpop.f32.mrb[0].mxu0
    %v1586 = vadd.f32 %v1517, %v1585
    %v1587 = vpop.f32.mrb[0].mxu0
    %1588 = vmatprep.mubr.f32.mxu0 0.0
    %1589 = vmatmul.mubr.f32.gmra.mrb[0].mxu0 %v1435
    %v1590 = vpop.f32.mrb[0].mxu0
    %v1591 = vadd.f32 %v1517, %v1590
    %v1592 = vpop.f32.mrb[0].mxu0
    %1593 = vmatprep.mubr.f32.mxu0 0.0
    %1594 = vmatmul.mubr.f32.gmra.mrb[0].mxu0 %v1440
    %v1595 = vpop.f32.mrb[0].mxu0
    %v1596 = vadd.f32 %v1517, %v1595
    %v1597 = vpop.f32.mrb[0].mxu0
    %1598 = vmatprep.mubr.f32.mxu0 0.0
    %1599 = vmatmul.mubr.f32.gmra.mrb[0].mxu0 %v1443
    %v1600 = vpop.f32.mrb[0].mxu0
    %v1601 = vadd.f32 %v1517, %v1600
    %v1602 = vpop.f32.mrb[0].mxu0
    %1603 = vmatprep.mubr.f32.mxu0 0.0
    %1604 = vmatmul.mubr.f32.gmra.mrb[0].mxu0 %v1448
    %v1605 = vpop.f32.mrb[0].mxu0
    %v1606 = vadd.f32 %v1517, %v1605
    %v1607 = vpop.f32.mrb[0].mxu0
    %1608 = vmatprep.mubr.f32.mxu0 0.0
    %1609 = vmatmul.mubr.f32.gmra.mrb[0].mxu0 %v1451
    %v1610 = vpop.f32.mrb[0].mxu0
    %v1611 = vadd.f32 %v1517, %v1610
    %v1612 = vpop.f32.mrb[0].mxu0
    %1613 = vmatprep.mubr.f32.mxu0 0.0
    %1614 = vmatmul.mubr.f32.gmra.mrb[0].mxu0 %v1456
    %v1615 = vpop.f32.mrb[0].mxu0
    %v1616 = vadd.f32 %v1517, %v1615
    %v1617 = vpop.f32.mrb[0].mxu0
    %1618 = vmatprep.mubr.f32.mxu0 0.0
    %1619 = vmatmul.mubr.f32.gmra.mrb[0].mxu0 %v1459
    %v1620 = vpop.f32.mrb[0].mxu0
    %v1621 = vadd.f32 %v1517, %v1620
    %v1622 = vpop.f32.mrb[0].mxu0
    %1623 = vmatprep.mubr.f32.mxu0 0.0
    %1624 = vmatmul.mubr.f32.gmra.mrb[0].mxu0 %v1464
    %v1625 = vpop.f32.mrb[0].mxu0
    %v1626 = vadd.f32 %v1517, %v1625
    %v1627 = vpop.f32.mrb[0].mxu0
    %1628 = vmatprep.mubr.f32.mxu0 0.0
    %1629 = vmatmul.mubr.f32.gmra.mrb[0].mxu0 %v1467
    %v1630 = vpop.f32.mrb[0].mxu0
    %v1631 = vadd.f32 %v1517, %v1630
    %v1632 = vpop.f32.mrb[0].mxu0
    %1633 = vmatprep.mubr.f32.mxu0 0.0
    %1634 = vmatmul.mubr.f32.gmra.mrb[0].mxu0 %v1472
    %v1635 = vpop.f32.mrb[0].mxu0
    %v1636 = vadd.f32 %v1517, %v1635
    %v1637 = vpop.f32.mrb[0].mxu0
    %1638 = vmatprep.mubr.f32.mxu0 0.0
    %1639 = vmatmul.mubr.f32.gmra.mrb[0].mxu0 %v1475
    %v1640 = vpop.f32.mrb[0].mxu0
    %v1641 = vadd.f32 %v1517, %v1640
    %v1642 = vpop.f32.mrb[0].mxu0
    %1643 = vmatprep.mubr.f32.mxu0 0.0
    %1644 = vmatmul.mubr.f32.gmra.mrb[0].mxu0 %v1480
    %v1645 = vpop.f32.mrb[0].mxu0
    %v1646 = vadd.f32 %v1517, %v1645
    %v1647 = vpop.f32.mrb[0].mxu0
    %1648 = vmatprep.mubr.f32.mxu0 0.0
    %1649 = vmatmul.mubr.f32.gmra.mrb[0].mxu0 %v1483
    %v1650 = vpop.f32.mrb[0].mxu0
    %v1651 = vadd.f32 %v1517, %v1650
    %v1652 = vpop.f32.mrb[0].mxu0
    %1653 = vmatprep.mubr.f32.mxu0 0.0
    %1654 = vmatmul.mubr.f32.gmra.mrb[0].mxu0 %v1488
    %v1655 = vpop.f32.mrb[0].mxu0
    %v1656 = vadd.f32 %v1517, %v1655
    %v1657 = vpop.f32.mrb[0].mxu0
    %1658 = vmatprep.mubr.f32.mxu0 0.0
    %1659 = vmatmul.mubr.f32.gmra.mrb[0].mxu0 %v1491
    %v1660 = vpop.f32.mrb[0].mxu0
    %v1661 = vadd.f32 %v1517, %v1660
    %v1662 = vpop.f32.mrb[0].mxu0
    %1663 = vdwg.mxu0
    %v1664 = vmax.f32 %v1586, 0.0
    %v1665 = vmax.f32 %v1591, 0.0
    %v1666 = vmax.f32 %v1596, 0.0
    %v1667 = vmax.f32 %v1601, 0.0
    %v1668 = vmax.f32 %v1606, 0.0
    %v1669 = vmax.f32 %v1611, 0.0
    %v1670 = vmax.f32 %v1616, 0.0
    %v1671 = vmax.f32 %v1621, 0.0
    %v1672 = vmax.f32 %v1626, 0.0
    %v1673 = vmax.f32 %v1631, 0.0
    %v1674 = vmax.f32 %v1636, 0.0
    %v1675 = vmax.f32 %v1641, 0.0
    %v1676 = vmax.f32 %v1646, 0.0
    %v1677 = vmax.f32 %v1651, 0.0
    %v1678 = vmax.f32 %v1656, 0.0
    %v1679 = vmax.f32 %v1661, 0.0
    %1680 = vst [vmem:[#allocation2] sm:$0xff] %v1664
    %1681 = vst [vmem:[#allocation2 + $0x8] sm:$0xff] %v1665
    %1682 = vst [vmem:[#allocation2 + $0x10] sm:$0xff] %v1666
    %1683 = vst [vmem:[#allocation2 + $0x18] sm:$0xff] %v1667
    %1684 = vst [vmem:[#allocation2 + $0x20] sm:$0xff] %v1668
    %1685 = vst [vmem:[#allocation2 + $0x28] sm:$0xff] %v1669
    %1686 = vst [vmem:[#allocation2 + $0x30] sm:$0xff] %v1670
    %1687 = vst [vmem:[#allocation2 + $0x38] sm:$0xff] %v1671
    %1688 = vst [vmem:[#allocation2 + $0x40] sm:$0xff] %v1672
    %1689 = vst [vmem:[#allocation2 + $0x48] sm:$0xff] %v1673
    %1690 = vst [vmem:[#allocation2 + $0x50] sm:$0xff] %v1674
    %1691 = vst [vmem:[#allocation2 + $0x58] sm:$0xff] %v1675
    %1692 = vst [vmem:[#allocation2 + $0x60] sm:$0xff] %v1676
    %1693 = vst [vmem:[#allocation2 + $0x68] sm:$0xff] %v1677
    %1694 = vst [vmem:[#allocation2 + $0x70] sm:$0xff] %v1678
    %1695 = vst [vmem:[#allocation2 + $0x78] sm:$0xff] %v1679
    %v1696 = vld [vmem:[#allocation3] sm:$0xf]
    %v1697 = vld [vmem:[#allocation3 + $0x4] sm:$0xf]
    %v1698 = vld [vmem:[#allocation3 + $0x8] sm:$0xf]
    %v1699 = vld [vmem:[#allocation3 + $0xc] sm:$0xf]
    %v1700 = vld [vmem:[#allocation3 + $0x10] sm:$0xf]
    %v1701 = vld [vmem:[#allocation3 + $0x14] sm:$0xf]
    %v1702 = vld [vmem:[#allocation3 + $0x18] sm:$0xf]
    %v1703 = vld [vmem:[#allocation3 + $0x1c] sm:$0xf]
    %v1704 = vld [vmem:[#allocation3 + $0x20] sm:$0xf]
    %v1705 = vld [vmem:[#allocation3 + $0x24] sm:$0xf]
    %v1706 = vld [vmem:[#allocation3 + $0x28] sm:$0xf]
    %v1707 = vld [vmem:[#allocation3 + $0x2c] sm:$0xf]
    %v1708 = vld [vmem:[#allocation3 + $0x30] sm:$0xf]
    %v1709 = vld [vmem:[#allocation3 + $0x34] sm:$0xf]
    %v1710 = vld [vmem:[#allocation3 + $0x38] sm:$0xf]
    %v1711 = vld [vmem:[#allocation3 + $0x3c] sm:$0xf]
    %v1712 = vld [vmem:[#allocation2] sm:$0xff]
    %v1713 = vld [vmem:[#allocation2 + $0x8] sm:$0xff]
    %v1714 = vld [vmem:[#allocation2 + $0x10] sm:$0xff]
    %v1715 = vld [vmem:[#allocation2 + $0x18] sm:$0xff]
    %v1716 = vld [vmem:[#allocation2 + $0x20] sm:$0xff]
    %v1717 = vld [vmem:[#allocation2 + $0x28] sm:$0xff]
    %v1718 = vld [vmem:[#allocation2 + $0x30] sm:$0xff]
    %v1719 = vld [vmem:[#allocation2 + $0x38] sm:$0xff]
    %v1720 = vld [vmem:[#allocation2 + $0x40] sm:$0xff]
    %v1721 = vld [vmem:[#allocation2 + $0x48] sm:$0xff]
    %v1722 = vld [vmem:[#allocation2 + $0x50] sm:$0xff]
    %v1723 = vld [vmem:[#allocation2 + $0x58] sm:$0xff]
    %v1724 = vld [vmem:[#allocation2 + $0x60] sm:$0xff]
    %v1725 = vld [vmem:[#allocation2 + $0x68] sm:$0xff]
    %v1726 = vld [vmem:[#allocation2 + $0x70] sm:$0xff]
    %v1727 = vld [vmem:[#allocation2 + $0x78] sm:$0xff]
    %v1728 = vpack.c.bf16 %v1713, %v1712
    %v1729 = vpack.c.bf16 %v1715, %v1714
    %v1730 = vpack.c.bf16 %v1717, %v1716
    %v1731 = vpack.c.bf16 %v1719, %v1718
    %v1732 = vpack.c.bf16 %v1721, %v1720
    %v1733 = vpack.c.bf16 %v1723, %v1722
    %v1734 = vpack.c.bf16 %v1725, %v1724
    %v1735 = vpack.c.bf16 %v1727, %v1726
    %v1752 = vunpack.c.l.b16 %v1696
    %v1753 = vunpack.c.l.b16 %v1697
    %v1754 = vunpack.c.l.b16 %v1698
    %v1755 = vunpack.c.l.b16 %v1699
    %v1756 = vunpack.c.l.b16 %v1700
    %v1757 = vunpack.c.l.b16 %v1701
    %v1758 = vunpack.c.l.b16 %v1702
    %v1759 = vunpack.c.l.b16 %v1703
    %v1760 = vunpack.c.l.b16 %v1704
    %v1761 = vunpack.c.l.b16 %v1705
    %v1762 = vunpack.c.l.b16 %v1706
    %v1763 = vunpack.c.l.b16 %v1707
    %v1764 = vunpack.c.l.b16 %v1708
    %v1765 = vunpack.c.l.b16 %v1709
    %v1766 = vunpack.c.l.b16 %v1710
    %v1767 = vunpack.c.l.b16 %v1711
    %v1768 = vpack.c.b16 %v1753, %v1752
    %v1769 = vpack.c.b16 %v1755, %v1754
    %v1770 = vpack.c.b16 %v1757, %v1756
    %v1771 = vpack.c.b16 %v1759, %v1758
    %v1772 = vpack.c.b16 %v1761, %v1760
    %v1773 = vpack.c.b16 %v1763, %v1762
    %v1774 = vpack.c.b16 %v1765, %v1764
    %v1775 = vpack.c.b16 %v1767, %v1766
    %1784 = vmatprep.subr.bf16.mxu0 0
    %1785 = vmatpush1.bf16.msra.mxu0 %v1728
    %1786 = vmatprep.subr.bf16.mxu0 0
    %1787 = vmatpush1.bf16.msra.mxu0 %v1729
    %1788 = vmatprep.subr.bf16.mxu0 0
    %1789 = vmatpush1.bf16.msra.mxu0 %v1730
    %1790 = vmatprep.subr.bf16.mxu0 0
    %1791 = vmatpush1.bf16.msra.mxu0 %v1731
    %1792 = vmatprep.subr.bf16.mxu0 0
    %1793 = vmatpush1.bf16.msra.mxu0 %v1732
    %1794 = vmatprep.subr.bf16.mxu0 0
    %1795 = vmatpush1.bf16.msra.mxu0 %v1733
    %1796 = vmatprep.subr.bf16.mxu0 0
    %1797 = vmatpush1.bf16.msra.mxu0 %v1734
    %1798 = vmatprep.subr.bf16.mxu0 0
    %1799 = vmatpush1.bf16.msra.mxu0 %v1735
    %1800 = vmatprep.subr.bf16.mxu0 0
    %1801 = vmatpush1.bf16.msra.mxu0 0
    %1802 = vmatprep.subr.bf16.mxu0 0
    %1803 = vmatpush1.bf16.msra.mxu0 0
    %1804 = vmatprep.subr.bf16.mxu0 0
    %1805 = vmatpush1.bf16.msra.mxu0 0
    %1806 = vmatprep.subr.bf16.mxu0 0
    %1807 = vmatpush1.bf16.msra.mxu0 0
    %1808 = vmatprep.subr.bf16.mxu0 0
    %1809 = vmatpush1.bf16.msra.mxu0 0
    %1810 = vmatprep.subr.bf16.mxu0 0
    %1811 = vmatpush1.bf16.msra.mxu0 0
    %1812 = vmatprep.subr.bf16.mxu0 0
    %1813 = vmatpush1.bf16.msra.mxu0 0
    %1814 = vmatprep.subr.bf16.mxu0 0
    %1815 = vmatpush1.bf16.msra.mxu0 0
    %1816 = vmatprep.mubr.bf16.mxu0 0
    %1817 = vmatmul.mubr.bf16.gmra.mrb[0].mxu0 %v1768
    %v1818 = vpop.f32.mrb[0].mxu0
    %v1819 = vadd.f32 0.0, %v1818
    %v1820 = vpop.f32.mrb[0].mxu0
    %v1821 = vpop.f32.mrb[0].mxu0
    %v1822 = vadd.f32 0.0, %v1821
    %v1823 = vpop.f32.mrb[0].mxu0
    %1824 = vmatprep.mubr.bf16.mxu0 0
    %1825 = vmatmul.mubr.bf16.gmra.mrb[0].mxu0 %v1769
    %v1826 = vpop.f32.mrb[0].mxu0
    %v1827 = vadd.f32 0.0, %v1826
    %v1828 = vpop.f32.mrb[0].mxu0
    %v1829 = vpop.f32.mrb[0].mxu0
    %v1830 = vadd.f32 0.0, %v1829
    %v1831 = vpop.f32.mrb[0].mxu0
    %1832 = vmatprep.mubr.bf16.mxu0 0
    %1833 = vmatmul.mubr.bf16.gmra.mrb[0].mxu0 %v1770
    %v1834 = vpop.f32.mrb[0].mxu0
    %v1835 = vadd.f32 0.0, %v1834
    %v1836 = vpop.f32.mrb[0].mxu0
    %v1837 = vpop.f32.mrb[0].mxu0
    %v1838 = vadd.f32 0.0, %v1837
    %v1839 = vpop.f32.mrb[0].mxu0
    %1840 = vmatprep.mubr.bf16.mxu0 0
    %1841 = vmatmul.mubr.bf16.gmra.mrb[0].mxu0 %v1771
    %v1842 = vpop.f32.mrb[0].mxu0
    %v1843 = vadd.f32 0.0, %v1842
    %v1844 = vpop.f32.mrb[0].mxu0
    %v1845 = vpop.f32.mrb[0].mxu0
    %v1846 = vadd.f32 0.0, %v1845
    %v1847 = vpop.f32.mrb[0].mxu0
    %1848 = vmatprep.mubr.bf16.mxu0 0
    %1849 = vmatmul.mubr.bf16.gmra.mrb[0].mxu0 %v1772
    %v1850 = vpop.f32.mrb[0].mxu0
    %v1851 = vadd.f32 0.0, %v1850
    %v1852 = vpop.f32.mrb[0].mxu0
    %v1853 = vpop.f32.mrb[0].mxu0
    %v1854 = vadd.f32 0.0, %v1853
    %v1855 = vpop.f32.mrb[0].mxu0
    %1856 = vmatprep.mubr.bf16.mxu0 0
    %1857 = vmatmul.mubr.bf16.gmra.mrb[0].mxu0 %v1773
    %v1858 = vpop.f32.mrb[0].mxu0
    %v1859 = vadd.f32 0.0, %v1858
    %v1860 = vpop.f32.mrb[0].mxu0
    %v1861 = vpop.f32.mrb[0].mxu0
    %v1862 = vadd.f32 0.0, %v1861
    %v1863 = vpop.f32.mrb[0].mxu0
    %1864 = vmatprep.mubr.bf16.mxu0 0
    %1865 = vmatmul.mubr.bf16.gmra.mrb[0].mxu0 %v1774
    %v1866 = vpop.f32.mrb[0].mxu0
    %v1867 = vadd.f32 0.0, %v1866
    %v1868 = vpop.f32.mrb[0].mxu0
    %v1869 = vpop.f32.mrb[0].mxu0
    %v1870 = vadd.f32 0.0, %v1869
    %v1871 = vpop.f32.mrb[0].mxu0
    %1872 = vmatprep.mubr.bf16.mxu0 0
    %1873 = vmatmul.mubr.bf16.gmra.mrb[0].mxu0 %v1775
    %v1874 = vpop.f32.mrb[0].mxu0
    %v1875 = vadd.f32 0.0, %v1874
    %v1876 = vpop.f32.mrb[0].mxu0
    %v1877 = vpop.f32.mrb[0].mxu0
    %v1878 = vadd.f32 0.0, %v1877
    %v1879 = vpop.f32.mrb[0].mxu0
    %1880 = vdwg.mxu0
    %s1881 = scalar_lea.vmem [#allocation8], 512
    %v1882 = vld [vmem:[%s1881] sm:$0xff]
    %v1883 = vld [vmem:[%s1881 + $0x8] sm:$0xff]
    %v1884 = vld [vmem:[%s1881 + $0x10] sm:$0xff]
    %v1885 = vld [vmem:[%s1881 + $0x18] sm:$0xff]
    %v1886 = vld [vmem:[%s1881 + $0x20] sm:$0xff]
    %v1887 = vld [vmem:[%s1881 + $0x28] sm:$0xff]
    %v1888 = vld [vmem:[%s1881 + $0x30] sm:$0xff]
    %v1889 = vld [vmem:[%s1881 + $0x38] sm:$0xff]
    %v1890 = vld [vmem:[%s1881 + $0x40] sm:$0xff]
    %v1891 = vld [vmem:[%s1881 + $0x48] sm:$0xff]
    %v1892 = vld [vmem:[%s1881 + $0x50] sm:$0xff]
    %v1893 = vld [vmem:[%s1881 + $0x58] sm:$0xff]
    %v1894 = vld [vmem:[%s1881 + $0x60] sm:$0xff]
    %v1895 = vld [vmem:[%s1881 + $0x68] sm:$0xff]
    %v1896 = vld [vmem:[%s1881 + $0x70] sm:$0xff]
    %v1897 = vld [vmem:[%s1881 + $0x78] sm:$0xff]
    %s1898 = scalar_lea.vmem %s3, 4
    %v1899 = vld [vmem:[%s1898] sm:$0x1]
    %v1901 = vlaneseq
    %v1902 = vshrl.u32 %v1901, 7
    %v1903 = vsub.s32 0, %v1902
    %v1904 = vrot.slane %v1899, %v1903
    %1906 = vmatprep.subr.mxu0 0.0
    %1907 = vmatpush1.msra.mxu0 %v1882
    %1908 = vmatprep.subr.mxu0 0.0
    %1909 = vmatpush1.msra.mxu0 %v1883
    %1910 = vmatprep.subr.mxu0 0.0
    %1911 = vmatpush1.msra.mxu0 %v1884
    %1912 = vmatprep.subr.mxu0 0.0
    %1913 = vmatpush1.msra.mxu0 %v1885
    %1914 = vmatprep.subr.mxu0 0.0
    %1915 = vmatpush1.msra.mxu0 %v1886
    %1916 = vmatprep.subr.mxu0 0.0
    %1917 = vmatpush1.msra.mxu0 %v1887
    %1918 = vmatprep.subr.mxu0 0.0
    %1919 = vmatpush1.msra.mxu0 %v1888
    %1920 = vmatprep.subr.mxu0 0.0
    %1921 = vmatpush1.msra.mxu0 %v1889
    %1922 = vmatprep.subr.mxu0 0.0
    %1923 = vmatpush1.msra.mxu0 %v1890
    %1924 = vmatprep.subr.mxu0 0.0
    %1925 = vmatpush1.msra.mxu0 %v1891
    %1926 = vmatprep.subr.mxu0 0.0
    %1927 = vmatpush1.msra.mxu0 %v1892
    %1928 = vmatprep.subr.mxu0 0.0
    %1929 = vmatpush1.msra.mxu0 %v1893
    %1930 = vmatprep.subr.mxu0 0.0
    %1931 = vmatpush1.msra.mxu0 %v1894
    %1932 = vmatprep.subr.mxu0 0.0
    %1933 = vmatpush1.msra.mxu0 %v1895
    %1934 = vmatprep.subr.mxu0 0.0
    %1935 = vmatpush1.msra.mxu0 %v1896
    %1936 = vmatprep.subr.mxu0 0.0
    %1937 = vmatpush1.msra.mxu0 %v1897
    %1938 = vmatprep.subr.mxu0 0.0
    %1939 = vmatpush1.msra.mxu0 0.0
    %1940 = vmatprep.subr.mxu0 0.0
    %1941 = vmatpush1.msra.mxu0 0.0
    %1942 = vmatprep.subr.mxu0 0.0
    %1943 = vmatpush1.msra.mxu0 0.0
    %1944 = vmatprep.subr.mxu0 0.0
    %1945 = vmatpush1.msra.mxu0 0.0
    %1946 = vmatprep.subr.mxu0 0.0
    %1947 = vmatpush1.msra.mxu0 0.0
    %1948 = vmatprep.subr.mxu0 0.0
    %1949 = vmatpush1.msra.mxu0 0.0
    %1950 = vmatprep.subr.mxu0 0.0
    %1951 = vmatpush1.msra.mxu0 0.0
    %1952 = vmatprep.subr.mxu0 0.0
    %1953 = vmatpush1.msra.mxu0 0.0
    %1954 = vmatprep.subr.mxu0 0.0
    %1955 = vmatpush1.msra.mxu0 0.0
    %1956 = vmatprep.subr.mxu0 0.0
    %1957 = vmatpush1.msra.mxu0 0.0
    %1958 = vmatprep.subr.mxu0 0.0
    %1959 = vmatpush1.msra.mxu0 0.0
    %1960 = vmatprep.subr.mxu0 0.0
    %1961 = vmatpush1.msra.mxu0 0.0
    %1962 = vmatprep.subr.mxu0 0.0
    %1963 = vmatpush1.msra.mxu0 0.0
    %1964 = vmatprep.subr.mxu0 0.0
    %1965 = vmatpush1.msra.mxu0 0.0
    %1966 = vmatprep.subr.mxu0 0.0
    %1967 = vmatpush1.msra.mxu0 0.0
    %1968 = vmatprep.subr.mxu0 0.0
    %1969 = vmatpush1.msra.mxu0 0.0
    %1970 = vmatprep.mubr.f32.mxu0 0.0
    %1971 = vmatmul.mubr.f32.gmra.mrb[0].mxu0 %v1819
    %v1972 = vpop.f32.mrb[0].mxu0
    %v1973 = vadd.f32 %v1904, %v1972
    %v1974 = vpop.f32.mrb[0].mxu0
    %1975 = vmatprep.mubr.f32.mxu0 0.0
    %1976 = vmatmul.mubr.f32.gmra.mrb[0].mxu0 %v1822
    %v1977 = vpop.f32.mrb[0].mxu0
    %v1978 = vadd.f32 %v1904, %v1977
    %v1979 = vpop.f32.mrb[0].mxu0
    %1980 = vmatprep.mubr.f32.mxu0 0.0
    %1981 = vmatmul.mubr.f32.gmra.mrb[0].mxu0 %v1827
    %v1982 = vpop.f32.mrb[0].mxu0
    %v1983 = vadd.f32 %v1904, %v1982
    %v1984 = vpop.f32.mrb[0].mxu0
    %1985 = vmatprep.mubr.f32.mxu0 0.0
    %1986 = vmatmul.mubr.f32.gmra.mrb[0].mxu0 %v1830
    %v1987 = vpop.f32.mrb[0].mxu0
    %v1988 = vadd.f32 %v1904, %v1987
    %v1989 = vpop.f32.mrb[0].mxu0
    %1990 = vmatprep.mubr.f32.mxu0 0.0
    %1991 = vmatmul.mubr.f32.gmra.mrb[0].mxu0 %v1835
    %v1992 = vpop.f32.mrb[0].mxu0
    %v1993 = vadd.f32 %v1904, %v1992
    %v1994 = vpop.f32.mrb[0].mxu0
    %1995 = vmatprep.mubr.f32.mxu0 0.0
    %1996 = vmatmul.mubr.f32.gmra.mrb[0].mxu0 %v1838
    %v1997 = vpop.f32.mrb[0].mxu0
    %v1998 = vadd.f32 %v1904, %v1997
    %v1999 = vpop.f32.mrb[0].mxu0
    %2000 = vmatprep.mubr.f32.mxu0 0.0
    %2001 = vmatmul.mubr.f32.gmra.mrb[0].mxu0 %v1843
    %v2002 = vpop.f32.mrb[0].mxu0
    %v2003 = vadd.f32 %v1904, %v2002
    %v2004 = vpop.f32.mrb[0].mxu0
    %2005 = vmatprep.mubr.f32.mxu0 0.0
    %2006 = vmatmul.mubr.f32.gmra.mrb[0].mxu0 %v1846
    %v2007 = vpop.f32.mrb[0].mxu0
    %v2008 = vadd.f32 %v1904, %v2007
    %v2009 = vpop.f32.mrb[0].mxu0
    %2010 = vmatprep.mubr.f32.mxu0 0.0
    %2011 = vmatmul.mubr.f32.gmra.mrb[0].mxu0 %v1851
    %v2012 = vpop.f32.mrb[0].mxu0
    %v2013 = vadd.f32 %v1904, %v2012
    %v2014 = vpop.f32.mrb[0].mxu0
    %2015 = vmatprep.mubr.f32.mxu0 0.0
    %2016 = vmatmul.mubr.f32.gmra.mrb[0].mxu0 %v1854
    %v2017 = vpop.f32.mrb[0].mxu0
    %v2018 = vadd.f32 %v1904, %v2017
    %v2019 = vpop.f32.mrb[0].mxu0
    %2020 = vmatprep.mubr.f32.mxu0 0.0
    %2021 = vmatmul.mubr.f32.gmra.mrb[0].mxu0 %v1859
    %v2022 = vpop.f32.mrb[0].mxu0
    %v2023 = vadd.f32 %v1904, %v2022
    %v2024 = vpop.f32.mrb[0].mxu0
    %2025 = vmatprep.mubr.f32.mxu0 0.0
    %2026 = vmatmul.mubr.f32.gmra.mrb[0].mxu0 %v1862
    %v2027 = vpop.f32.mrb[0].mxu0
    %v2028 = vadd.f32 %v1904, %v2027
    %v2029 = vpop.f32.mrb[0].mxu0
    %2030 = vmatprep.mubr.f32.mxu0 0.0
    %2031 = vmatmul.mubr.f32.gmra.mrb[0].mxu0 %v1867
    %v2032 = vpop.f32.mrb[0].mxu0
    %v2033 = vadd.f32 %v1904, %v2032
    %v2034 = vpop.f32.mrb[0].mxu0
    %2035 = vmatprep.mubr.f32.mxu0 0.0
    %2036 = vmatmul.mubr.f32.gmra.mrb[0].mxu0 %v1870
    %v2037 = vpop.f32.mrb[0].mxu0
    %v2038 = vadd.f32 %v1904, %v2037
    %v2039 = vpop.f32.mrb[0].mxu0
    %2040 = vmatprep.mubr.f32.mxu0 0.0
    %2041 = vmatmul.mubr.f32.gmra.mrb[0].mxu0 %v1875
    %v2042 = vpop.f32.mrb[0].mxu0
    %v2043 = vadd.f32 %v1904, %v2042
    %v2044 = vpop.f32.mrb[0].mxu0
    %2045 = vmatprep.mubr.f32.mxu0 0.0
    %2046 = vmatmul.mubr.f32.gmra.mrb[0].mxu0 %v1878
    %v2047 = vpop.f32.mrb[0].mxu0
    %v2048 = vadd.f32 %v1904, %v2047
    %v2049 = vpop.f32.mrb[0].mxu0
    %2050 = vdwg.mxu0
    %2051 = vst [vmem:[#allocation2] sm:$0xff] %v1973
    %2052 = vst [vmem:[#allocation2 + $0x8] sm:$0xff] %v1978
    %2053 = vst [vmem:[#allocation2 + $0x10] sm:$0xff] %v1983
    %2054 = vst [vmem:[#allocation2 + $0x18] sm:$0xff] %v1988
    %2055 = vst [vmem:[#allocation2 + $0x20] sm:$0xff] %v1993
    %2056 = vst [vmem:[#allocation2 + $0x28] sm:$0xff] %v1998
    %2057 = vst [vmem:[#allocation2 + $0x30] sm:$0xff] %v2003
    %2058 = vst [vmem:[#allocation2 + $0x38] sm:$0xff] %v2008
    %2059 = vst [vmem:[#allocation2 + $0x40] sm:$0xff] %v2013
    %2060 = vst [vmem:[#allocation2 + $0x48] sm:$0xff] %v2018
    %2061 = vst [vmem:[#allocation2 + $0x50] sm:$0xff] %v2023
    %2062 = vst [vmem:[#allocation2 + $0x58] sm:$0xff] %v2028
    %2063 = vst [vmem:[#allocation2 + $0x60] sm:$0xff] %v2033
    %2064 = vst [vmem:[#allocation2 + $0x68] sm:$0xff] %v2038
    %2065 = vst [vmem:[#allocation2 + $0x70] sm:$0xff] %v2043
    %2066 = vst [vmem:[#allocation2 + $0x78] sm:$0xff] %v2048
    %v2067 = vld [vmem:[%s4] sm:$0xff]
    %v2068 = vld [vmem:[#allocation2] sm:$0xff]
    %v2069 = vld [vmem:[#allocation2 + $0x8] sm:$0xff]
    %v2070 = vld [vmem:[#allocation2 + $0x10] sm:$0xff]
    %v2071 = vld [vmem:[#allocation2 + $0x18] sm:$0xff]
    %v2072 = vld [vmem:[#allocation2 + $0x20] sm:$0xff]
    %v2073 = vld [vmem:[#allocation2 + $0x28] sm:$0xff]
    %v2074 = vld [vmem:[#allocation2 + $0x30] sm:$0xff]
    %v2075 = vld [vmem:[#allocation2 + $0x38] sm:$0xff]
    %v2076 = vld [vmem:[#allocation2 + $0x40] sm:$0xff]
    %v2077 = vld [vmem:[#allocation2 + $0x48] sm:$0xff]
    %v2078 = vld [vmem:[#allocation2 + $0x50] sm:$0xff]
    %v2079 = vld [vmem:[#allocation2 + $0x58] sm:$0xff]
    %v2080 = vld [vmem:[#allocation2 + $0x60] sm:$0xff]
    %v2081 = vld [vmem:[#allocation2 + $0x68] sm:$0xff]
    %v2082 = vld [vmem:[#allocation2 + $0x70] sm:$0xff]
    %v2083 = vld [vmem:[#allocation2 + $0x78] sm:$0xff]
    %2084 = vmatprep.subr.mxu0 0.0
    %2085 = vmatpush1.msra.mxu0 %v2068
    %2086 = vmatprep.subr.mxu0 0.0
    %2087 = vmatpush1.msra.mxu0 %v2069
    %2088 = vmatprep.subr.mxu0 0.0
    %2089 = vmatpush1.msra.mxu0 %v2070
    %2090 = vmatprep.subr.mxu0 0.0
    %2091 = vmatpush1.msra.mxu0 %v2071
    %2092 = vmatprep.subr.mxu0 0.0
    %2093 = vmatpush1.msra.mxu0 %v2072
    %2094 = vmatprep.subr.mxu0 0.0
    %2095 = vmatpush1.msra.mxu0 %v2073
    %2096 = vmatprep.subr.mxu0 0.0
    %2097 = vmatpush1.msra.mxu0 %v2074
    %2098 = vmatprep.subr.mxu0 0.0
    %2099 = vmatpush1.msra.mxu0 %v2075
    %2100 = vmatprep.subr.mxu0 0.0
    %2101 = vmatpush1.msra.mxu0 %v2076
    %2102 = vmatprep.subr.mxu0 0.0
    %2103 = vmatpush1.msra.mxu0 %v2077
    %2104 = vmatprep.subr.mxu0 0.0
    %2105 = vmatpush1.msra.mxu0 %v2078
    %2106 = vmatprep.subr.mxu0 0.0
    %2107 = vmatpush1.msra.mxu0 %v2079
    %2108 = vmatprep.subr.mxu0 0.0
    %2109 = vmatpush1.msra.mxu0 %v2080
    %2110 = vmatprep.subr.mxu0 0.0
    %2111 = vmatpush1.msra.mxu0 %v2081
    %2112 = vmatprep.subr.mxu0 0.0
    %2113 = vmatpush1.msra.mxu0 %v2082
    %2114 = vmatprep.subr.mxu0 0.0
    %2115 = vmatpush1.msra.mxu0 %v2083
    %2116 = vmatprep.subr.mxu0 0.0
    %2117 = vmatpush1.msra.mxu0 0.0
    %2118 = vmatprep.subr.mxu0 0.0
    %2119 = vmatpush1.msra.mxu0 0.0
    %2120 = vmatprep.subr.mxu0 0.0
    %2121 = vmatpush1.msra.mxu0 0.0
    %2122 = vmatprep.subr.mxu0 0.0
    %2123 = vmatpush1.msra.mxu0 0.0
    %2124 = vmatprep.subr.mxu0 0.0
    %2125 = vmatpush1.msra.mxu0 0.0
    %2126 = vmatprep.subr.mxu0 0.0
    %2127 = vmatpush1.msra.mxu0 0.0
    %2128 = vmatprep.subr.mxu0 0.0
    %2129 = vmatpush1.msra.mxu0 0.0
    %2130 = vmatprep.subr.mxu0 0.0
    %2131 = vmatpush1.msra.mxu0 0.0
    %2132 = vmatprep.subr.mxu0 0.0
    %2133 = vmatpush1.msra.mxu0 0.0
    %2134 = vmatprep.subr.mxu0 0.0
    %2135 = vmatpush1.msra.mxu0 0.0
    %2136 = vmatprep.subr.mxu0 0.0
    %2137 = vmatpush1.msra.mxu0 0.0
    %2138 = vmatprep.subr.mxu0 0.0
    %2139 = vmatpush1.msra.mxu0 0.0
    %2140 = vmatprep.subr.mxu0 0.0
    %2141 = vmatpush1.msra.mxu0 0.0
    %2142 = vmatprep.subr.mxu0 0.0
    %2143 = vmatpush1.msra.mxu0 0.0
    %2144 = vmatprep.subr.mxu0 0.0
    %2145 = vmatpush1.msra.mxu0 0.0
    %2146 = vmatprep.subr.mxu0 0.0
    %2147 = vmatpush1.msra.mxu0 0.0
    %2148 = vmatprep.mubr.f32.mxu0 0.0
    %2149 = vmatmul.mubr.f32.gmra.mrb[0].mxu0 %v2067
    %v2150 = vpop.f32.mrb[0].mxu0
    %v2151 = vadd.f32 0.0, %v2150
    %v2152 = vpop.f32.mrb[0].mxu0
    %2153 = vdwg.mxu0
    %v2154 = vld [vmem:[#allocation9] sm:$0xff]
    %v2155 = vld [vmem:[#allocation9 + $0x8] sm:$0xff]
    %v2156 = vld [vmem:[#allocation9 + $0x10] sm:$0xff]
    %v2157 = vld [vmem:[#allocation9 + $0x18] sm:$0xff]
    %v2158 = vld [vmem:[#allocation9 + $0x20] sm:$0xff]
    %v2159 = vld [vmem:[#allocation9 + $0x28] sm:$0xff]
    %v2160 = vld [vmem:[#allocation9 + $0x30] sm:$0xff]
    %v2161 = vld [vmem:[#allocation9 + $0x38] sm:$0xff]
    %v2162 = vld [vmem:[#allocation9 + $0x40] sm:$0xff]
    %v2163 = vld [vmem:[#allocation9 + $0x48] sm:$0xff]
    %v2164 = vld [vmem:[#allocation9 + $0x50] sm:$0xff]
    %v2165 = vld [vmem:[#allocation9 + $0x58] sm:$0xff]
    %v2166 = vld [vmem:[#allocation9 + $0x60] sm:$0xff]
    %v2167 = vld [vmem:[#allocation9 + $0x68] sm:$0xff]
    %v2168 = vld [vmem:[#allocation9 + $0x70] sm:$0xff]
    %v2169 = vld [vmem:[#allocation9 + $0x78] sm:$0xff]
    %v2170 = vld [vmem:[%s6] sm:$0x1]
    %v2172 = vlaneseq
    %v2173 = vshrl.u32 %v2172, 7
    %v2174 = vsub.s32 0, %v2173
    %v2175 = vrot.slane %v2170, %v2174
    %2177 = vmatprep.subr.mxu0 0.0
    %2178 = vmatpush1.msra.mxu0 %v2154
    %2179 = vmatprep.subr.mxu0 0.0
    %2180 = vmatpush1.msra.mxu0 %v2155
    %2181 = vmatprep.subr.mxu0 0.0
    %2182 = vmatpush1.msra.mxu0 %v2156
    %2183 = vmatprep.subr.mxu0 0.0
    %2184 = vmatpush1.msra.mxu0 %v2157
    %2185 = vmatprep.subr.mxu0 0.0
    %2186 = vmatpush1.msra.mxu0 %v2158
    %2187 = vmatprep.subr.mxu0 0.0
    %2188 = vmatpush1.msra.mxu0 %v2159
    %2189 = vmatprep.subr.mxu0 0.0
    %2190 = vmatpush1.msra.mxu0 %v2160
    %2191 = vmatprep.subr.mxu0 0.0
    %2192 = vmatpush1.msra.mxu0 %v2161
    %2193 = vmatprep.subr.mxu0 0.0
    %2194 = vmatpush1.msra.mxu0 %v2162
    %2195 = vmatprep.subr.mxu0 0.0
    %2196 = vmatpush1.msra.mxu0 %v2163
    %2197 = vmatprep.subr.mxu0 0.0
    %2198 = vmatpush1.msra.mxu0 %v2164
    %2199 = vmatprep.subr.mxu0 0.0
    %2200 = vmatpush1.msra.mxu0 %v2165
    %2201 = vmatprep.subr.mxu0 0.0
    %2202 = vmatpush1.msra.mxu0 %v2166
    %2203 = vmatprep.subr.mxu0 0.0
    %2204 = vmatpush1.msra.mxu0 %v2167
    %2205 = vmatprep.subr.mxu0 0.0
    %2206 = vmatpush1.msra.mxu0 %v2168
    %2207 = vmatprep.subr.mxu0 0.0
    %2208 = vmatpush1.msra.mxu0 %v2169
    %2209 = vmatprep.subr.mxu0 0.0
    %2210 = vmatpush1.msra.mxu0 0.0
    %2211 = vmatprep.subr.mxu0 0.0
    %2212 = vmatpush1.msra.mxu0 0.0
    %2213 = vmatprep.subr.mxu0 0.0
    %2214 = vmatpush1.msra.mxu0 0.0
    %2215 = vmatprep.subr.mxu0 0.0
    %2216 = vmatpush1.msra.mxu0 0.0
    %2217 = vmatprep.subr.mxu0 0.0
    %2218 = vmatpush1.msra.mxu0 0.0
    %2219 = vmatprep.subr.mxu0 0.0
    %2220 = vmatpush1.msra.mxu0 0.0
    %2221 = vmatprep.subr.mxu0 0.0
    %2222 = vmatpush1.msra.mxu0 0.0
    %2223 = vmatprep.subr.mxu0 0.0
    %2224 = vmatpush1.msra.mxu0 0.0
    %2225 = vmatprep.subr.mxu0 0.0
    %2226 = vmatpush1.msra.mxu0 0.0
    %2227 = vmatprep.subr.mxu0 0.0
    %2228 = vmatpush1.msra.mxu0 0.0
    %2229 = vmatprep.subr.mxu0 0.0
    %2230 = vmatpush1.msra.mxu0 0.0
    %2231 = vmatprep.subr.mxu0 0.0
    %2232 = vmatpush1.msra.mxu0 0.0
    %2233 = vmatprep.subr.mxu0 0.0
    %2234 = vmatpush1.msra.mxu0 0.0
    %2235 = vmatprep.subr.mxu0 0.0
    %2236 = vmatpush1.msra.mxu0 0.0
    %2237 = vmatprep.subr.mxu0 0.0
    %2238 = vmatpush1.msra.mxu0 0.0
    %2239 = vmatprep.subr.mxu0 0.0
    %2240 = vmatpush1.msra.mxu0 0.0
    %2241 = vmatprep.mubr.f32.mxu0 0.0
    %2242 = vmatmul.mubr.f32.gmra.mrb[0].mxu0 %v2151
    %v2243 = vpop.f32.mrb[0].mxu0
    %v2244 = vadd.f32 %v2175, %v2243
    %v2245 = vpop.f32.mrb[0].mxu0
    %2246 = vdwg.mxu0
    %v2247 = vmax.f32 %v2244, 0.0
    %v2248 = vld [vmem:[#allocation11] sm:$0xff]
    %v2249 = vld [vmem:[#allocation11 + $0x8] sm:$0xff]
    %v2250 = vld [vmem:[#allocation11 + $0x10] sm:$0xff]
    %v2251 = vld [vmem:[#allocation11 + $0x18] sm:$0xff]
    %v2252 = vld [vmem:[#allocation11 + $0x20] sm:$0xff]
    %v2253 = vld [vmem:[#allocation11 + $0x28] sm:$0xff]
    %v2254 = vld [vmem:[#allocation11 + $0x30] sm:$0xff]
    %v2255 = vld [vmem:[#allocation11 + $0x38] sm:$0xff]
    %v2256 = vld [vmem:[#allocation11 + $0x40] sm:$0xff]
    %v2257 = vld [vmem:[#allocation11 + $0x48] sm:$0xff]
    %v2258 = vld [vmem:[#allocation11 + $0x50] sm:$0xff]
    %v2259 = vld [vmem:[#allocation11 + $0x58] sm:$0xff]
    %v2260 = vld [vmem:[#allocation11 + $0x60] sm:$0xff]
    %v2261 = vld [vmem:[#allocation11 + $0x68] sm:$0xff]
    %v2262 = vld [vmem:[#allocation11 + $0x70] sm:$0xff]
    %v2263 = vld [vmem:[#allocation11 + $0x78] sm:$0xff]
    %v2264 = vld [vmem:[%s8] sm:$0x1]
    %v2266 = vlaneseq
    %v2267 = vshrl.u32 %v2266, 7
    %v2268 = vsub.s32 0, %v2267
    %v2269 = vrot.slane %v2264, %v2268
    %2271 = vmatprep.subr.mxu0 0.0
    %2272 = vmatpush1.msra.mxu0 %v2248
    %2273 = vmatprep.subr.mxu0 0.0
    %2274 = vmatpush1.msra.mxu0 %v2249
    %2275 = vmatprep.subr.mxu0 0.0
    %2276 = vmatpush1.msra.mxu0 %v2250
    %2277 = vmatprep.subr.mxu0 0.0
    %2278 = vmatpush1.msra.mxu0 %v2251
    %2279 = vmatprep.subr.mxu0 0.0
    %2280 = vmatpush1.msra.mxu0 %v2252
    %2281 = vmatprep.subr.mxu0 0.0
    %2282 = vmatpush1.msra.mxu0 %v2253
    %2283 = vmatprep.subr.mxu0 0.0
    %2284 = vmatpush1.msra.mxu0 %v2254
    %2285 = vmatprep.subr.mxu0 0.0
    %2286 = vmatpush1.msra.mxu0 %v2255
    %2287 = vmatprep.subr.mxu0 0.0
    %2288 = vmatpush1.msra.mxu0 %v2256
    %2289 = vmatprep.subr.mxu0 0.0
    %2290 = vmatpush1.msra.mxu0 %v2257
    %2291 = vmatprep.subr.mxu0 0.0
    %2292 = vmatpush1.msra.mxu0 %v2258
    %2293 = vmatprep.subr.mxu0 0.0
    %2294 = vmatpush1.msra.mxu0 %v2259
    %2295 = vmatprep.subr.mxu0 0.0
    %2296 = vmatpush1.msra.mxu0 %v2260
    %2297 = vmatprep.subr.mxu0 0.0
    %2298 = vmatpush1.msra.mxu0 %v2261
    %2299 = vmatprep.subr.mxu0 0.0
    %2300 = vmatpush1.msra.mxu0 %v2262
    %2301 = vmatprep.subr.mxu0 0.0
    %2302 = vmatpush1.msra.mxu0 %v2263
    %2303 = vmatprep.subr.mxu0 0.0
    %2304 = vmatpush1.msra.mxu0 0.0
    %2305 = vmatprep.subr.mxu0 0.0
    %2306 = vmatpush1.msra.mxu0 0.0
    %2307 = vmatprep.subr.mxu0 0.0
    %2308 = vmatpush1.msra.mxu0 0.0
    %2309 = vmatprep.subr.mxu0 0.0
    %2310 = vmatpush1.msra.mxu0 0.0
    %2311 = vmatprep.subr.mxu0 0.0
    %2312 = vmatpush1.msra.mxu0 0.0
    %2313 = vmatprep.subr.mxu0 0.0
    %2314 = vmatpush1.msra.mxu0 0.0
    %2315 = vmatprep.subr.mxu0 0.0
    %2316 = vmatpush1.msra.mxu0 0.0
    %2317 = vmatprep.subr.mxu0 0.0
    %2318 = vmatpush1.msra.mxu0 0.0
    %2319 = vmatprep.subr.mxu0 0.0
    %2320 = vmatpush1.msra.mxu0 0.0
    %2321 = vmatprep.subr.mxu0 0.0
    %2322 = vmatpush1.msra.mxu0 0.0
    %2323 = vmatprep.subr.mxu0 0.0
    %2324 = vmatpush1.msra.mxu0 0.0
    %2325 = vmatprep.subr.mxu0 0.0
    %2326 = vmatpush1.msra.mxu0 0.0
    %2327 = vmatprep.subr.mxu0 0.0
    %2328 = vmatpush1.msra.mxu0 0.0
    %2329 = vmatprep.subr.mxu0 0.0
    %2330 = vmatpush1.msra.mxu0 0.0
    %2331 = vmatprep.subr.mxu0 0.0
    %2332 = vmatpush1.msra.mxu0 0.0
    %2333 = vmatprep.subr.mxu0 0.0
    %2334 = vmatpush1.msra.mxu0 0.0
    %2335 = vmatprep.mubr.f32.mxu0 0.0
    %2336 = vmatmul.mubr.f32.gmra.mrb[0].mxu0 %v2247
    %v2337 = vpop.f32.mrb[0].mxu0
    %v2338 = vadd.f32 %v2269, %v2337
    %v2339 = vpop.f32.mrb[0].mxu0
    %2340 = vdwg.mxu0
    %2341 = vst [vmem:[#allocation12] sm:$0xff] %v2338
    // Predicated region
    $region58: #{tpu_custom_call.1} parent=1 // pred_check
      _
    $region59: #{tpu_custom_call.1} parent=1 // pred_check_branch
      %2343 = sbr.rel (0) target = $region61
    $region60: #{tpu_custom_call.1} parent=1 // pred_region
      %s2345 = ssub.s32 128, 128
      %2346 = vsyncadd [#allocation5], %s2345
      %s2348 = sshll.u32 [#allocation12], 4
      %s2349 = int_to_ptr.vmem [resolvable:$true] %s2348
      %2351 = dma.vmem_to_hbm [thread:$0]  %s2349, 128, %s9, [#allocation5]
    $region61: #{tpu_custom_call.1} parent=1 // pred_fallthru
      _
    // Predicated region
    $region62: #{tpu_custom_call.1} parent=1 // pred_check
      _
    $region63: #{tpu_custom_call.1} parent=1 // pred_check_branch
      %2353 = sbr.rel (0) target = $region65
    $region64: #{tpu_custom_call.1} parent=1 // pred_region
      %2354 = dma.done [#allocation5], 128
    $region65: #{tpu_custom_call.1} parent=1 // pred_fallthru
      _
    %2355 = vsyncpa [#allocation4], 1
    %2356 = vsyncpa [#allocation7], 1
    %2357 = vsyncpa [#allocation10], 1
    %2358 = vsyncpa [#allocation5], 1

</llo_original>
